<compile_context>
chip_gen: v7x
topology: tpu7x:2x2x1
jax: 0.10.0
libtpu: 0.0.40
codegen_flags: <defaults>
</compile_context>

<pallas_src>
import functools

import jax
import jax.numpy as jnp
from jax.experimental import pallas as pl
from jax.experimental.pallas import tpu as pltpu


def _gru_recurrence_kernel(gi_ref, h0_ref, whh_ref, bhn_ref, hs_ref, h_scr,
                           *, Tt, H, unroll):
    """Serial GRU recurrence over one (batch block, time chunk).

    gi_ref : (Tt, Bt, 3H) packed input-side gate pre-activations
             (b_ih + b_hh folded in for r/z, b_ih only for n).
    h0_ref : (Bt, H) initial hidden for this batch block.
    whh_ref: (H, 3H) packed recurrent weights (resident across the grid).
    bhn_ref: (1, H) recurrent bias of the n gate (stays inside the r-gating).
    hs_ref : (Tt, Bt, H) hidden-state sequence output for this block.
    h_scr  : (Bt, H) VMEM carry across time chunks.
    """
    # Initialize the carry from h0 on the first time chunk of this batch block.
    @pl.when(pl.program_id(1) == 0)
    def _():
        h_scr[...] = h0_ref[...]

    # Hoist resident loads / broadcasts out of the serial loop.
    whh = whh_ref[...]                                       # (H, 3H)
    bhn_b = jnp.broadcast_to(bhn_ref[...], h_scr.shape)      # (Bt, H), hoisted

    def step(t, h):
        # Single packed MXU matmul per step; gates are static slices.
        gh = jnp.dot(h, whh, preferred_element_type=jnp.float32)   # (Bt, 3H)
        gi = gi_ref[t]                                              # (Bt, 3H)
        r = jax.nn.sigmoid(gi[:, 0:H] + gh[:, 0:H])
        z = jax.nn.sigmoid(gi[:, H:2 * H] + gh[:, H:2 * H])
        n = jnp.tanh(gi[:, 2 * H:3 * H] + r * (gh[:, 2 * H:3 * H] + bhn_b))
        h_new = n + z * (h - n)            # == (1 - z) * n + z * h
        hs_ref[t] = h_new                  # hidden-state sequence output
        return h_new                       # carried in vregs within the chunk

    h_last = jax.lax.fori_loop(0, Tt, step, h_scr[...], unroll=unroll)
    h_scr[...] = h_last                    # carry to the next time chunk


def _largest_divisor_at_most(n, cap):
    cap = max(1, min(cap, n))
    for d in range(cap, 0, -1):
        if n % d == 0:
            return d
    return 1


def gru_decoder_pallas(inputs, hidden, params, *, batch_first=True,
                       max_time_tile=256):
    """inputs: (B,T,D_in) if batch_first else (T,B,D_in); hidden: (1,B,H)."""
    w_ih, w_hh, b_ih, b_hh, w_l, b_l = params
    H = hidden.shape[-1]

    # Packed bias: r/z fold b_ih + b_hh; n keeps only b_ih (b_hh_n stays inside
    # the r-gated term, matching torch.nn.GRU semantics).
    b_pack = jnp.concatenate([b_ih[0:H] + b_hh[0:H],
                              b_ih[H:2 * H] + b_hh[H:2 * H],
                              b_ih[2 * H:3 * H]]).reshape(1, 1, 3 * H)
    b_hn = b_hh[2 * H:3 * H].reshape(1, H)
    whh_t = w_hh.T                                           # (H, 3H) packed

    # Hoisted input projection over ALL time steps as ONE GEMM; the batch_first
    # transpose is folded into the time-major einsum output layout.
    eq_in = 'btd,hd->tbh' if batch_first else 'tbd,hd->tbh'
    gi = jnp.einsum(eq_in, inputs, w_ih) + b_pack            # (T, B, 3H)
    T, B = gi.shape[0], gi.shape[1]
    h0 = hidden[0]                                           # (B, H)

    # Tile selection: batch blocks of 8 sublanes when possible (feeds the
    # "parallel" axis / v7x 2-TC sharding); time chunks sized so the
    # double-buffered gi + hs blocks stay well inside default scoped VMEM.
    Bt = 8 if (B % 8 == 0) else B
    tt_cap = max(1, (12 * 1024 * 1024) // (2 * 4 * Bt * 4 * H))
    Tt = _largest_divisor_at_most(T, min(tt_cap, max_time_tile))
    unroll = min(Tt, 8)   # moderate unroll: LLO visibility without vreg bloat

    # Explicit scoped-VMEM budget (double-buffered streaming blocks + resident
    # weights + carry), capped below v7x's 64 MiB physical VMEM.
    vmem_bytes = 4 * (2 * Tt * Bt * 3 * H      # gi blocks (double-buffered)
                      + 2 * Tt * Bt * H        # hs blocks (double-buffered)
                      + 2 * H * 3 * H          # resident W_hh
                      + 2 * Bt * H + 2 * H     # h0 / b_hn
                      + Bt * H)                # carry scratch
    vmem_limit = int(min(max(2 * vmem_bytes, 16 * 1024 * 1024),
                         48 * 1024 * 1024))

    kernel = functools.partial(_gru_recurrence_kernel, Tt=Tt, H=H,
                               unroll=unroll)
    hs = pl.pallas_call(
        kernel,
        out_shape=jax.ShapeDtypeStruct((T, B, H), jnp.float32),
        grid=(B // Bt, T // Tt),
        in_specs=[
            pl.BlockSpec((Tt, Bt, 3 * H), lambda b, t: (t, b, 0)),  # gi stream
            pl.BlockSpec((Bt, H), lambda b, t: (b, 0)),             # h0
            pl.BlockSpec((H, 3 * H), lambda b, t: (0, 0)),          # W_hh (resident)
            pl.BlockSpec((1, H), lambda b, t: (0, 0)),              # b_hn (resident)
        ],
        out_specs=pl.BlockSpec((Tt, Bt, H), lambda b, t: (t, b, 0)),
        scratch_shapes=[pltpu.VMEM((Bt, H), jnp.float32)],           # h carry
        compiler_params=pltpu.CompilerParams(
            dimension_semantics=("parallel", "arbitrary"),
            vmem_limit_bytes=vmem_limit),
    )(gi, h0, whh_t, b_hn)

    # Final hidden straight from the sequence output (no extra kernel output).
    h_fin = hs[T - 1][None]                                  # (1, B, H)

    # Hoisted output head: one batched (T*B, H) x (H, D_in) GEMM; batch_first
    # transpose folded into the einsum output layout.
    eq_out = 'tbh,dh->btd' if batch_first else 'tbh,dh->tbd'
    out = jnp.einsum(eq_out, hs, w_l) + b_l
    return out, h_fin


def gru_decoder_ref(inputs, hidden, params, *, batch_first=True):
    """Pure-JAX reference (mirrors torch.nn.GRU + nn.Linear)."""
    w_ih, w_hh, b_ih, b_hh, w_l, b_l = params
    x_tm = jnp.transpose(inputs, (1, 0, 2)) if batch_first else inputs
    H = hidden.shape[-1]

    def step(h, x):
        gi = x @ w_ih.T + b_ih
        gh = h @ w_hh.T + b_hh
        r = jax.nn.sigmoid(gi[:, :H] + gh[:, :H])
        z = jax.nn.sigmoid(gi[:, H:2 * H] + gh[:, H:2 * H])
        n = jnp.tanh(gi[:, 2 * H:] + r * gh[:, 2 * H:])
        h_new = (1.0 - z) * n + z * h
        return h_new, h_new

    h_last, hs = jax.lax.scan(step, hidden[0], x_tm)
    out = hs @ w_l.T + b_l
    if batch_first:
        out = jnp.transpose(out, (1, 0, 2))
    return out, h_last[None]


if __name__ == "__main__":
    # Module config: hidden_structs=[8, 8] -> hidden_dim = 2*sum = 32, GRU,
    # batch_first=True.  B=16, T=16 with Bt=8, Tt=8 exercises both grid axes.
    hidden_structs = [8, 8]
    H = 2 * sum(hidden_structs)        # 32
    D_in = 8
    B, T = 16, 16

    key = jax.random.PRNGKey(0)
    ks = jax.random.split(key, 8)
    bound = 1.0 / jnp.sqrt(H)          # PyTorch default uniform init range

    w_ih = jax.random.uniform(ks[0], (3 * H, D_in), jnp.float32, -bound, bound)
    w_hh = jax.random.uniform(ks[1], (3 * H, H), jnp.float32, -bound, bound)
    b_ih = jax.random.uniform(ks[2], (3 * H,), jnp.float32, -bound, bound)
    b_hh = jax.random.uniform(ks[3], (3 * H,), jnp.float32, -bound, bound)
    w_l = jax.random.uniform(ks[4], (D_in, H), jnp.float32, -bound, bound)
    b_l = jax.random.uniform(ks[5], (D_in,), jnp.float32, -bound, bound)
    params = (w_ih, w_hh, b_ih, b_hh, w_l, b_l)

    inputs = jax.random.normal(ks[6], (B, T, D_in), jnp.float32)   # batch_first
    hidden0 = jax.random.normal(ks[7], (1, B, H), jnp.float32)

    # max_time_tile=8 forces Tt=8 so the time ("arbitrary") axis has 2 chunks
    # and the carry-across-chunks path is exercised even at this small T.
    out, h_fin = gru_decoder_pallas(inputs, hidden0, params,
                                    batch_first=True, max_time_tile=8)
    jax.block_until_ready((out, h_fin))

    out_ref, h_ref = gru_decoder_ref(inputs, hidden0, params, batch_first=True)
    assert out.shape == (B, T, D_in) and h_fin.shape == (1, B, H)
    assert jnp.allclose(out, out_ref, atol=1e-4, rtol=1e-4)
    assert jnp.allclose(h_fin, h_ref, atol=1e-4, rtol=1e-4)

    print("KERNEL_OK")
</pallas_src>

<mosaic_0001>
module attributes {stable_mosaic.version = 11 : i64} {
  func.func @_gru_recurrence_kernel(%arg0: i32, %arg1: i32, %arg2: memref<8x8x96xf32, #tpu.memory_space<vmem>>, %arg3: memref<8x32xf32, #tpu.memory_space<vmem>>, %arg4: memref<32x96xf32, #tpu.memory_space<vmem>>, %arg5: memref<1x32xf32, #tpu.memory_space<vmem>>, %arg6: memref<8x8x32xf32, #tpu.memory_space<vmem>>, %arg7: memref<8x32xf32, #tpu.memory_space<vmem>>) attributes {dimension_semantics = [#tpu.dimension_semantics<parallel>, #tpu.dimension_semantics<arbitrary>], iteration_bounds = array<i64: 2, 2>, scalar_prefetch = 0 : i64, scratch_operands = 1 : i64, tpu.core_type = #tpu.core_type<tc>, window_params = [{transform_indices = @transform_0, window_bounds = array<i64: 8, 8, 96>}, {transform_indices = @transform_1, window_bounds = array<i64: 8, 32>}, {pipeline_mode = #tpu.pipeline_mode<synchronous>, transform_indices = @transform_2, window_bounds = array<i64: 32, 96>}, {pipeline_mode = #tpu.pipeline_mode<synchronous>, transform_indices = @transform_3, window_bounds = array<i64: 1, 32>}, {transform_indices = @transform_4, window_bounds = array<i64: 8, 8, 32>}]} {
    %c0_i32 = arith.constant 0 : i32
    %0 = arith.cmpi eq, %arg1, %c0_i32 : i32
    %1 = arith.extui %0 : i1 to i32
    %c0_i32_0 = arith.constant 0 : i32
    %2 = arith.cmpi ne, %1, %c0_i32_0 : i32
    scf.if %2 {
      %c0_64 = arith.constant 0 : index
      %c0_65 = arith.constant 0 : index
      %273 = vector.load %arg3[%c0_64, %c0_65] : memref<8x32xf32, #tpu.memory_space<vmem>>, vector<8x32xf32>
      %c0_66 = arith.constant 0 : index
      %c0_67 = arith.constant 0 : index
      %274 = vector.load %arg7[%c0_66, %c0_67] : memref<8x32xf32, #tpu.memory_space<vmem>>, vector<8x32xf32>
      tpu.vector_store %arg7[%c0_66, %c0_67], %273 {strides = array<i32>} : memref<8x32xf32, #tpu.memory_space<vmem>>, vector<8x32xf32>,
    } else {
    }
    %c0 = arith.constant 0 : index
    %c0_1 = arith.constant 0 : index
    %3 = vector.load %arg4[%c0, %c0_1] : memref<32x96xf32, #tpu.memory_space<vmem>>, vector<32x96xf32>
    %c0_2 = arith.constant 0 : index
    %c0_3 = arith.constant 0 : index
    %4 = vector.load %arg5[%c0_2, %c0_3] : memref<1x32xf32, #tpu.memory_space<vmem>>, vector<1x32xf32>
    %5 = vector.shape_cast %4 : vector<1x32xf32> to vector<1x32xf32>
    %6 = vector.broadcast %5 : vector<1x32xf32> to vector<8x32xf32>
    %c0_4 = arith.constant 0 : index
    %c0_5 = arith.constant 0 : index
    %7 = vector.load %arg7[%c0_4, %c0_5] : memref<8x32xf32, #tpu.memory_space<vmem>>, vector<8x32xf32>
    %c0_i32_6 = arith.constant 0 : i32
    %cst = arith.constant dense<0.000000e+00> : vector<8x96xf32>
    %8 = tpu.matmul %7, %3, %cst {dimension_numbers = #tpu.dot_dimension_numbers<[1], [0], [0], [1], [0, 0, 1, 1], [], []>} : vector<8x32xf32>, vector<32x96xf32>, vector<8x96xf32> -> vector<8x96xf32>
    %9 = arith.index_cast %c0_i32_6 : i32 to index
    %c0_7 = arith.constant 0 : index
    %c0_8 = arith.constant 0 : index
    %10 = vector.load %arg2[%9, %c0_7, %c0_8] : memref<8x8x96xf32, #tpu.memory_space<vmem>>, vector<1x8x96xf32>
    %11 = vector.shape_cast %10 : vector<1x8x96xf32> to vector<8x96xf32>
    %12 = vector.extract_strided_slice %11 {offsets = [0, 0], sizes = [8, 32], strides = [1, 1]} : vector<8x96xf32> to vector<8x32xf32>
    %13 = vector.extract_strided_slice %8 {offsets = [0, 0], sizes = [8, 32], strides = [1, 1]} : vector<8x96xf32> to vector<8x32xf32>
    %14 = arith.addf %12, %13 : vector<8x32xf32>
    %15 = arith.negf %14 : vector<8x32xf32>
    %16 = math.exp %15 : vector<8x32xf32>
    %cst_9 = arith.constant 1.000000e+00 : f32
    %17 = vector.broadcast %cst_9 : f32 to vector<8x32xf32>
    %18 = arith.addf %17, %16 : vector<8x32xf32>
    %19 = arith.divf %17, %18 : vector<8x32xf32>
    %20 = vector.extract_strided_slice %11 {offsets = [0, 32], sizes = [8, 32], strides = [1, 1]} : vector<8x96xf32> to vector<8x32xf32>
    %21 = vector.extract_strided_slice %8 {offsets = [0, 32], sizes = [8, 32], strides = [1, 1]} : vector<8x96xf32> to vector<8x32xf32>
    %22 = arith.addf %20, %21 : vector<8x32xf32>
    %23 = arith.negf %22 : vector<8x32xf32>
    %24 = math.exp %23 : vector<8x32xf32>
    %cst_10 = arith.constant 1.000000e+00 : f32
    %25 = vector.broadcast %cst_10 : f32 to vector<8x32xf32>
    %26 = arith.addf %25, %24 : vector<8x32xf32>
    %27 = arith.divf %25, %26 : vector<8x32xf32>
    %28 = vector.extract_strided_slice %11 {offsets = [0, 64], sizes = [8, 32], strides = [1, 1]} : vector<8x96xf32> to vector<8x32xf32>
    %29 = vector.extract_strided_slice %8 {offsets = [0, 64], sizes = [8, 32], strides = [1, 1]} : vector<8x96xf32> to vector<8x32xf32>
    %30 = arith.addf %29, %6 : vector<8x32xf32>
    %31 = arith.mulf %19, %30 : vector<8x32xf32>
    %32 = arith.addf %28, %31 : vector<8x32xf32>
    %33 = math.tanh %32 : vector<8x32xf32>
    %34 = arith.subf %7, %33 : vector<8x32xf32>
    %35 = arith.mulf %27, %34 : vector<8x32xf32>
    %36 = arith.addf %33, %35 : vector<8x32xf32>
    %37 = arith.index_cast %c0_i32_6 : i32 to index
    %c0_11 = arith.constant 0 : index
    %c0_12 = arith.constant 0 : index
    %38 = vector.load %arg6[%37, %c0_11, %c0_12] : memref<8x8x32xf32, #tpu.memory_space<vmem>>, vector<1x8x32xf32>
    %39 = vector.shape_cast %38 : vector<1x8x32xf32> to vector<8x32xf32>
    %40 = vector.shape_cast %36 : vector<8x32xf32> to vector<1x8x32xf32>
    tpu.vector_store %arg6[%37, %c0_11, %c0_12], %40 {strides = array<i32>} : memref<8x8x32xf32, #tpu.memory_space<vmem>>, vector<1x8x32xf32>,
    %c1_i32 = arith.constant 1 : i32
    %cst_13 = arith.constant dense<0.000000e+00> : vector<8x96xf32>
    %41 = tpu.matmul %36, %3, %cst_13 {dimension_numbers = #tpu.dot_dimension_numbers<[1], [0], [0], [1], [0, 0, 1, 1], [], []>} : vector<8x32xf32>, vector<32x96xf32>, vector<8x96xf32> -> vector<8x96xf32>
    %42 = arith.index_cast %c1_i32 : i32 to index
    %c0_14 = arith.constant 0 : index
    %c0_15 = arith.constant 0 : index
    %43 = vector.load %arg2[%42, %c0_14, %c0_15] : memref<8x8x96xf32, #tpu.memory_space<vmem>>, vector<1x8x96xf32>
    %44 = vector.shape_cast %43 : vector<1x8x96xf32> to vector<8x96xf32>
    %45 = vector.extract_strided_slice %44 {offsets = [0, 0], sizes = [8, 32], strides = [1, 1]} : vector<8x96xf32> to vector<8x32xf32>
    %46 = vector.extract_strided_slice %41 {offsets = [0, 0], sizes = [8, 32], strides = [1, 1]} : vector<8x96xf32> to vector<8x32xf32>
    %47 = arith.addf %45, %46 : vector<8x32xf32>
    %48 = arith.negf %47 : vector<8x32xf32>
    %49 = math.exp %48 : vector<8x32xf32>
    %cst_16 = arith.constant 1.000000e+00 : f32
    %50 = vector.broadcast %cst_16 : f32 to vector<8x32xf32>
    %51 = arith.addf %50, %49 : vector<8x32xf32>
    %52 = arith.divf %50, %51 : vector<8x32xf32>
    %53 = vector.extract_strided_slice %44 {offsets = [0, 32], sizes = [8, 32], strides = [1, 1]} : vector<8x96xf32> to vector<8x32xf32>
    %54 = vector.extract_strided_slice %41 {offsets = [0, 32], sizes = [8, 32], strides = [1, 1]} : vector<8x96xf32> to vector<8x32xf32>
    %55 = arith.addf %53, %54 : vector<8x32xf32>
    %56 = arith.negf %55 : vector<8x32xf32>
    %57 = math.exp %56 : vector<8x32xf32>
    %cst_17 = arith.constant 1.000000e+00 : f32
    %58 = vector.broadcast %cst_17 : f32 to vector<8x32xf32>
    %59 = arith.addf %58, %57 : vector<8x32xf32>
    %60 = arith.divf %58, %59 : vector<8x32xf32>
    %61 = vector.extract_strided_slice %44 {offsets = [0, 64], sizes = [8, 32], strides = [1, 1]} : vector<8x96xf32> to vector<8x32xf32>
    %62 = vector.extract_strided_slice %41 {offsets = [0, 64], sizes = [8, 32], strides = [1, 1]} : vector<8x96xf32> to vector<8x32xf32>
    %63 = arith.addf %62, %6 : vector<8x32xf32>
    %64 = arith.mulf %52, %63 : vector<8x32xf32>
    %65 = arith.addf %61, %64 : vector<8x32xf32>
    %66 = math.tanh %65 : vector<8x32xf32>
    %67 = arith.subf %36, %66 : vector<8x32xf32>
    %68 = arith.mulf %60, %67 : vector<8x32xf32>
    %69 = arith.addf %66, %68 : vector<8x32xf32>
    %70 = arith.index_cast %c1_i32 : i32 to index
    %c0_18 = arith.constant 0 : index
    %c0_19 = arith.constant 0 : index
    %71 = vector.load %arg6[%70, %c0_18, %c0_19] : memref<8x8x32xf32, #tpu.memory_space<vmem>>, vector<1x8x32xf32>
    %72 = vector.shape_cast %71 : vector<1x8x32xf32> to vector<8x32xf32>
    %73 = vector.shape_cast %69 : vector<8x32xf32> to vector<1x8x32xf32>
    tpu.vector_store %arg6[%70, %c0_18, %c0_19], %73 {strides = array<i32>} : memref<8x8x32xf32, #tpu.memory_space<vmem>>, vector<1x8x32xf32>,
    %c2_i32 = arith.constant 2 : i32
    %cst_20 = arith.constant dense<0.000000e+00> : vector<8x96xf32>
    %74 = tpu.matmul %69, %3, %cst_20 {dimension_numbers = #tpu.dot_dimension_numbers<[1], [0], [0], [1], [0, 0, 1, 1], [], []>} : vector<8x32xf32>, vector<32x96xf32>, vector<8x96xf32> -> vector<8x96xf32>
    %75 = arith.index_cast %c2_i32 : i32 to index
    %c0_21 = arith.constant 0 : index
    %c0_22 = arith.constant 0 : index
    %76 = vector.load %arg2[%75, %c0_21, %c0_22] : memref<8x8x96xf32, #tpu.memory_space<vmem>>, vector<1x8x96xf32>
    %77 = vector.shape_cast %76 : vector<1x8x96xf32> to vector<8x96xf32>
    %78 = vector.extract_strided_slice %77 {offsets = [0, 0], sizes = [8, 32], strides = [1, 1]} : vector<8x96xf32> to vector<8x32xf32>
    %79 = vector.extract_strided_slice %74 {offsets = [0, 0], sizes = [8, 32], strides = [1, 1]} : vector<8x96xf32> to vector<8x32xf32>
    %80 = arith.addf %78, %79 : vector<8x32xf32>
    %81 = arith.negf %80 : vector<8x32xf32>
    %82 = math.exp %81 : vector<8x32xf32>
    %cst_23 = arith.constant 1.000000e+00 : f32
    %83 = vector.broadcast %cst_23 : f32 to vector<8x32xf32>
    %84 = arith.addf %83, %82 : vector<8x32xf32>
    %85 = arith.divf %83, %84 : vector<8x32xf32>
    %86 = vector.extract_strided_slice %77 {offsets = [0, 32], sizes = [8, 32], strides = [1, 1]} : vector<8x96xf32> to vector<8x32xf32>
    %87 = vector.extract_strided_slice %74 {offsets = [0, 32], sizes = [8, 32], strides = [1, 1]} : vector<8x96xf32> to vector<8x32xf32>
    %88 = arith.addf %86, %87 : vector<8x32xf32>
    %89 = arith.negf %88 : vector<8x32xf32>
    %90 = math.exp %89 : vector<8x32xf32>
    %cst_24 = arith.constant 1.000000e+00 : f32
    %91 = vector.broadcast %cst_24 : f32 to vector<8x32xf32>
    %92 = arith.addf %91, %90 : vector<8x32xf32>
    %93 = arith.divf %91, %92 : vector<8x32xf32>
    %94 = vector.extract_strided_slice %77 {offsets = [0, 64], sizes = [8, 32], strides = [1, 1]} : vector<8x96xf32> to vector<8x32xf32>
    %95 = vector.extract_strided_slice %74 {offsets = [0, 64], sizes = [8, 32], strides = [1, 1]} : vector<8x96xf32> to vector<8x32xf32>
    %96 = arith.addf %95, %6 : vector<8x32xf32>
    %97 = arith.mulf %85, %96 : vector<8x32xf32>
    %98 = arith.addf %94, %97 : vector<8x32xf32>
    %99 = math.tanh %98 : vector<8x32xf32>
    %100 = arith.subf %69, %99 : vector<8x32xf32>
    %101 = arith.mulf %93, %100 : vector<8x32xf32>
    %102 = arith.addf %99, %101 : vector<8x32xf32>
    %103 = arith.index_cast %c2_i32 : i32 to index
    %c0_25 = arith.constant 0 : index
    %c0_26 = arith.constant 0 : index
    %104 = vector.load %arg6[%103, %c0_25, %c0_26] : memref<8x8x32xf32, #tpu.memory_space<vmem>>, vector<1x8x32xf32>
    %105 = vector.shape_cast %104 : vector<1x8x32xf32> to vector<8x32xf32>
    %106 = vector.shape_cast %102 : vector<8x32xf32> to vector<1x8x32xf32>
    tpu.vector_store %arg6[%103, %c0_25, %c0_26], %106 {strides = array<i32>} : memref<8x8x32xf32, #tpu.memory_space<vmem>>, vector<1x8x32xf32>,
    %c3_i32 = arith.constant 3 : i32
    %cst_27 = arith.constant dense<0.000000e+00> : vector<8x96xf32>
    %107 = tpu.matmul %102, %3, %cst_27 {dimension_numbers = #tpu.dot_dimension_numbers<[1], [0], [0], [1], [0, 0, 1, 1], [], []>} : vector<8x32xf32>, vector<32x96xf32>, vector<8x96xf32> -> vector<8x96xf32>
    %108 = arith.index_cast %c3_i32 : i32 to index
    %c0_28 = arith.constant 0 : index
    %c0_29 = arith.constant 0 : index
    %109 = vector.load %arg2[%108, %c0_28, %c0_29] : memref<8x8x96xf32, #tpu.memory_space<vmem>>, vector<1x8x96xf32>
    %110 = vector.shape_cast %109 : vector<1x8x96xf32> to vector<8x96xf32>
    %111 = vector.extract_strided_slice %110 {offsets = [0, 0], sizes = [8, 32], strides = [1, 1]} : vector<8x96xf32> to vector<8x32xf32>
    %112 = vector.extract_strided_slice %107 {offsets = [0, 0], sizes = [8, 32], strides = [1, 1]} : vector<8x96xf32> to vector<8x32xf32>
    %113 = arith.addf %111, %112 : vector<8x32xf32>
    %114 = arith.negf %113 : vector<8x32xf32>
    %115 = math.exp %114 : vector<8x32xf32>
    %cst_30 = arith.constant 1.000000e+00 : f32
    %116 = vector.broadcast %cst_30 : f32 to vector<8x32xf32>
    %117 = arith.addf %116, %115 : vector<8x32xf32>
    %118 = arith.divf %116, %117 : vector<8x32xf32>
    %119 = vector.extract_strided_slice %110 {offsets = [0, 32], sizes = [8, 32], strides = [1, 1]} : vector<8x96xf32> to vector<8x32xf32>
    %120 = vector.extract_strided_slice %107 {offsets = [0, 32], sizes = [8, 32], strides = [1, 1]} : vector<8x96xf32> to vector<8x32xf32>
    %121 = arith.addf %119, %120 : vector<8x32xf32>
    %122 = arith.negf %121 : vector<8x32xf32>
    %123 = math.exp %122 : vector<8x32xf32>
    %cst_31 = arith.constant 1.000000e+00 : f32
    %124 = vector.broadcast %cst_31 : f32 to vector<8x32xf32>
    %125 = arith.addf %124, %123 : vector<8x32xf32>
    %126 = arith.divf %124, %125 : vector<8x32xf32>
    %127 = vector.extract_strided_slice %110 {offsets = [0, 64], sizes = [8, 32], strides = [1, 1]} : vector<8x96xf32> to vector<8x32xf32>
    %128 = vector.extract_strided_slice %107 {offsets = [0, 64], sizes = [8, 32], strides = [1, 1]} : vector<8x96xf32> to vector<8x32xf32>
    %129 = arith.addf %128, %6 : vector<8x32xf32>
    %130 = arith.mulf %118, %129 : vector<8x32xf32>
    %131 = arith.addf %127, %130 : vector<8x32xf32>
    %132 = math.tanh %131 : vector<8x32xf32>
    %133 = arith.subf %102, %132 : vector<8x32xf32>
    %134 = arith.mulf %126, %133 : vector<8x32xf32>
    %135 = arith.addf %132, %134 : vector<8x32xf32>
    %136 = arith.index_cast %c3_i32 : i32 to index
    %c0_32 = arith.constant 0 : index
    %c0_33 = arith.constant 0 : index
    %137 = vector.load %arg6[%136, %c0_32, %c0_33] : memref<8x8x32xf32, #tpu.memory_space<vmem>>, vector<1x8x32xf32>
    %138 = vector.shape_cast %137 : vector<1x8x32xf32> to vector<8x32xf32>
    %139 = vector.shape_cast %135 : vector<8x32xf32> to vector<1x8x32xf32>
    tpu.vector_store %arg6[%136, %c0_32, %c0_33], %139 {strides = array<i32>} : memref<8x8x32xf32, #tpu.memory_space<vmem>>, vector<1x8x32xf32>,
    %c4_i32 = arith.constant 4 : i32
    %cst_34 = arith.constant dense<0.000000e+00> : vector<8x96xf32>
    %140 = tpu.matmul %135, %3, %cst_34 {dimension_numbers = #tpu.dot_dimension_numbers<[1], [0], [0], [1], [0, 0, 1, 1], [], []>} : vector<8x32xf32>, vector<32x96xf32>, vector<8x96xf32> -> vector<8x96xf32>
    %141 = arith.index_cast %c4_i32 : i32 to index
    %c0_35 = arith.constant 0 : index
    %c0_36 = arith.constant 0 : index
    %142 = vector.load %arg2[%141, %c0_35, %c0_36] : memref<8x8x96xf32, #tpu.memory_space<vmem>>, vector<1x8x96xf32>
    %143 = vector.shape_cast %142 : vector<1x8x96xf32> to vector<8x96xf32>
    %144 = vector.extract_strided_slice %143 {offsets = [0, 0], sizes = [8, 32], strides = [1, 1]} : vector<8x96xf32> to vector<8x32xf32>
    %145 = vector.extract_strided_slice %140 {offsets = [0, 0], sizes = [8, 32], strides = [1, 1]} : vector<8x96xf32> to vector<8x32xf32>
    %146 = arith.addf %144, %145 : vector<8x32xf32>
    %147 = arith.negf %146 : vector<8x32xf32>
    %148 = math.exp %147 : vector<8x32xf32>
    %cst_37 = arith.constant 1.000000e+00 : f32
    %149 = vector.broadcast %cst_37 : f32 to vector<8x32xf32>
    %150 = arith.addf %149, %148 : vector<8x32xf32>
    %151 = arith.divf %149, %150 : vector<8x32xf32>
    %152 = vector.extract_strided_slice %143 {offsets = [0, 32], sizes = [8, 32], strides = [1, 1]} : vector<8x96xf32> to vector<8x32xf32>
    %153 = vector.extract_strided_slice %140 {offsets = [0, 32], sizes = [8, 32], strides = [1, 1]} : vector<8x96xf32> to vector<8x32xf32>
    %154 = arith.addf %152, %153 : vector<8x32xf32>
    %155 = arith.negf %154 : vector<8x32xf32>
    %156 = math.exp %155 : vector<8x32xf32>
    %cst_38 = arith.constant 1.000000e+00 : f32
    %157 = vector.broadcast %cst_38 : f32 to vector<8x32xf32>
    %158 = arith.addf %157, %156 : vector<8x32xf32>
    %159 = arith.divf %157, %158 : vector<8x32xf32>
    %160 = vector.extract_strided_slice %143 {offsets = [0, 64], sizes = [8, 32], strides = [1, 1]} : vector<8x96xf32> to vector<8x32xf32>
    %161 = vector.extract_strided_slice %140 {offsets = [0, 64], sizes = [8, 32], strides = [1, 1]} : vector<8x96xf32> to vector<8x32xf32>
    %162 = arith.addf %161, %6 : vector<8x32xf32>
    %163 = arith.mulf %151, %162 : vector<8x32xf32>
    %164 = arith.addf %160, %163 : vector<8x32xf32>
    %165 = math.tanh %164 : vector<8x32xf32>
    %166 = arith.subf %135, %165 : vector<8x32xf32>
    %167 = arith.mulf %159, %166 : vector<8x32xf32>
    %168 = arith.addf %165, %167 : vector<8x32xf32>
    %169 = arith.index_cast %c4_i32 : i32 to index
    %c0_39 = arith.constant 0 : index
    %c0_40 = arith.constant 0 : index
    %170 = vector.load %arg6[%169, %c0_39, %c0_40] : memref<8x8x32xf32, #tpu.memory_space<vmem>>, vector<1x8x32xf32>
    %171 = vector.shape_cast %170 : vector<1x8x32xf32> to vector<8x32xf32>
    %172 = vector.shape_cast %168 : vector<8x32xf32> to vector<1x8x32xf32>
    tpu.vector_store %arg6[%169, %c0_39, %c0_40], %172 {strides = array<i32>} : memref<8x8x32xf32, #tpu.memory_space<vmem>>, vector<1x8x32xf32>,
    %c5_i32 = arith.constant 5 : i32
    %cst_41 = arith.constant dense<0.000000e+00> : vector<8x96xf32>
    %173 = tpu.matmul %168, %3, %cst_41 {dimension_numbers = #tpu.dot_dimension_numbers<[1], [0], [0], [1], [0, 0, 1, 1], [], []>} : vector<8x32xf32>, vector<32x96xf32>, vector<8x96xf32> -> vector<8x96xf32>
    %174 = arith.index_cast %c5_i32 : i32 to index
    %c0_42 = arith.constant 0 : index
    %c0_43 = arith.constant 0 : index
    %175 = vector.load %arg2[%174, %c0_42, %c0_43] : memref<8x8x96xf32, #tpu.memory_space<vmem>>, vector<1x8x96xf32>
    %176 = vector.shape_cast %175 : vector<1x8x96xf32> to vector<8x96xf32>
    %177 = vector.extract_strided_slice %176 {offsets = [0, 0], sizes = [8, 32], strides = [1, 1]} : vector<8x96xf32> to vector<8x32xf32>
    %178 = vector.extract_strided_slice %173 {offsets = [0, 0], sizes = [8, 32], strides = [1, 1]} : vector<8x96xf32> to vector<8x32xf32>
    %179 = arith.addf %177, %178 : vector<8x32xf32>
    %180 = arith.negf %179 : vector<8x32xf32>
    %181 = math.exp %180 : vector<8x32xf32>
    %cst_44 = arith.constant 1.000000e+00 : f32
    %182 = vector.broadcast %cst_44 : f32 to vector<8x32xf32>
    %183 = arith.addf %182, %181 : vector<8x32xf32>
    %184 = arith.divf %182, %183 : vector<8x32xf32>
    %185 = vector.extract_strided_slice %176 {offsets = [0, 32], sizes = [8, 32], strides = [1, 1]} : vector<8x96xf32> to vector<8x32xf32>
    %186 = vector.extract_strided_slice %173 {offsets = [0, 32], sizes = [8, 32], strides = [1, 1]} : vector<8x96xf32> to vector<8x32xf32>
    %187 = arith.addf %185, %186 : vector<8x32xf32>
    %188 = arith.negf %187 : vector<8x32xf32>
    %189 = math.exp %188 : vector<8x32xf32>
    %cst_45 = arith.constant 1.000000e+00 : f32
    %190 = vector.broadcast %cst_45 : f32 to vector<8x32xf32>
    %191 = arith.addf %190, %189 : vector<8x32xf32>
    %192 = arith.divf %190, %191 : vector<8x32xf32>
    %193 = vector.extract_strided_slice %176 {offsets = [0, 64], sizes = [8, 32], strides = [1, 1]} : vector<8x96xf32> to vector<8x32xf32>
    %194 = vector.extract_strided_slice %173 {offsets = [0, 64], sizes = [8, 32], strides = [1, 1]} : vector<8x96xf32> to vector<8x32xf32>
    %195 = arith.addf %194, %6 : vector<8x32xf32>
    %196 = arith.mulf %184, %195 : vector<8x32xf32>
    %197 = arith.addf %193, %196 : vector<8x32xf32>
    %198 = math.tanh %197 : vector<8x32xf32>
    %199 = arith.subf %168, %198 : vector<8x32xf32>
    %200 = arith.mulf %192, %199 : vector<8x32xf32>
    %201 = arith.addf %198, %200 : vector<8x32xf32>
    %202 = arith.index_cast %c5_i32 : i32 to index
    %c0_46 = arith.constant 0 : index
    %c0_47 = arith.constant 0 : index
    %203 = vector.load %arg6[%202, %c0_46, %c0_47] : memref<8x8x32xf32, #tpu.memory_space<vmem>>, vector<1x8x32xf32>
    %204 = vector.shape_cast %203 : vector<1x8x32xf32> to vector<8x32xf32>
    %205 = vector.shape_cast %201 : vector<8x32xf32> to vector<1x8x32xf32>
    tpu.vector_store %arg6[%202, %c0_46, %c0_47], %205 {strides = array<i32>} : memref<8x8x32xf32, #tpu.memory_space<vmem>>, vector<1x8x32xf32>,
    %c6_i32 = arith.constant 6 : i32
    %cst_48 = arith.constant dense<0.000000e+00> : vector<8x96xf32>
    %206 = tpu.matmul %201, %3, %cst_48 {dimension_numbers = #tpu.dot_dimension_numbers<[1], [0], [0], [1], [0, 0, 1, 1], [], []>} : vector<8x32xf32>, vector<32x96xf32>, vector<8x96xf32> -> vector<8x96xf32>
    %207 = arith.index_cast %c6_i32 : i32 to index
    %c0_49 = arith.constant 0 : index
    %c0_50 = arith.constant 0 : index
    %208 = vector.load %arg2[%207, %c0_49, %c0_50] : memref<8x8x96xf32, #tpu.memory_space<vmem>>, vector<1x8x96xf32>
    %209 = vector.shape_cast %208 : vector<1x8x96xf32> to vector<8x96xf32>
    %210 = vector.extract_strided_slice %209 {offsets = [0, 0], sizes = [8, 32], strides = [1, 1]} : vector<8x96xf32> to vector<8x32xf32>
    %211 = vector.extract_strided_slice %206 {offsets = [0, 0], sizes = [8, 32], strides = [1, 1]} : vector<8x96xf32> to vector<8x32xf32>
    %212 = arith.addf %210, %211 : vector<8x32xf32>
    %213 = arith.negf %212 : vector<8x32xf32>
    %214 = math.exp %213 : vector<8x32xf32>
    %cst_51 = arith.constant 1.000000e+00 : f32
    %215 = vector.broadcast %cst_51 : f32 to vector<8x32xf32>
    %216 = arith.addf %215, %214 : vector<8x32xf32>
    %217 = arith.divf %215, %216 : vector<8x32xf32>
    %218 = vector.extract_strided_slice %209 {offsets = [0, 32], sizes = [8, 32], strides = [1, 1]} : vector<8x96xf32> to vector<8x32xf32>
    %219 = vector.extract_strided_slice %206 {offsets = [0, 32], sizes = [8, 32], strides = [1, 1]} : vector<8x96xf32> to vector<8x32xf32>
    %220 = arith.addf %218, %219 : vector<8x32xf32>
    %221 = arith.negf %220 : vector<8x32xf32>
    %222 = math.exp %221 : vector<8x32xf32>
    %cst_52 = arith.constant 1.000000e+00 : f32
    %223 = vector.broadcast %cst_52 : f32 to vector<8x32xf32>
    %224 = arith.addf %223, %222 : vector<8x32xf32>
    %225 = arith.divf %223, %224 : vector<8x32xf32>
    %226 = vector.extract_strided_slice %209 {offsets = [0, 64], sizes = [8, 32], strides = [1, 1]} : vector<8x96xf32> to vector<8x32xf32>
    %227 = vector.extract_strided_slice %206 {offsets = [0, 64], sizes = [8, 32], strides = [1, 1]} : vector<8x96xf32> to vector<8x32xf32>
    %228 = arith.addf %227, %6 : vector<8x32xf32>
    %229 = arith.mulf %217, %228 : vector<8x32xf32>
    %230 = arith.addf %226, %229 : vector<8x32xf32>
    %231 = math.tanh %230 : vector<8x32xf32>
    %232 = arith.subf %201, %231 : vector<8x32xf32>
    %233 = arith.mulf %225, %232 : vector<8x32xf32>
    %234 = arith.addf %231, %233 : vector<8x32xf32>
    %235 = arith.index_cast %c6_i32 : i32 to index
    %c0_53 = arith.constant 0 : index
    %c0_54 = arith.constant 0 : index
    %236 = vector.load %arg6[%235, %c0_53, %c0_54] : memref<8x8x32xf32, #tpu.memory_space<vmem>>, vector<1x8x32xf32>
    %237 = vector.shape_cast %236 : vector<1x8x32xf32> to vector<8x32xf32>
    %238 = vector.shape_cast %234 : vector<8x32xf32> to vector<1x8x32xf32>
    tpu.vector_store %arg6[%235, %c0_53, %c0_54], %238 {strides = array<i32>} : memref<8x8x32xf32, #tpu.memory_space<vmem>>, vector<1x8x32xf32>,
    %c7_i32 = arith.constant 7 : i32
    %cst_55 = arith.constant dense<0.000000e+00> : vector<8x96xf32>
    %239 = tpu.matmul %234, %3, %cst_55 {dimension_numbers = #tpu.dot_dimension_numbers<[1], [0], [0], [1], [0, 0, 1, 1], [], []>} : vector<8x32xf32>, vector<32x96xf32>, vector<8x96xf32> -> vector<8x96xf32>
    %240 = arith.index_cast %c7_i32 : i32 to index
    %c0_56 = arith.constant 0 : index
    %c0_57 = arith.constant 0 : index
    %241 = vector.load %arg2[%240, %c0_56, %c0_57] : memref<8x8x96xf32, #tpu.memory_space<vmem>>, vector<1x8x96xf32>
    %242 = vector.shape_cast %241 : vector<1x8x96xf32> to vector<8x96xf32>
    %243 = vector.extract_strided_slice %242 {offsets = [0, 0], sizes = [8, 32], strides = [1, 1]} : vector<8x96xf32> to vector<8x32xf32>
    %244 = vector.extract_strided_slice %239 {offsets = [0, 0], sizes = [8, 32], strides = [1, 1]} : vector<8x96xf32> to vector<8x32xf32>
    %245 = arith.addf %243, %244 : vector<8x32xf32>
    %246 = arith.negf %245 : vector<8x32xf32>
    %247 = math.exp %246 : vector<8x32xf32>
    %cst_58 = arith.constant 1.000000e+00 : f32
    %248 = vector.broadcast %cst_58 : f32 to vector<8x32xf32>
    %249 = arith.addf %248, %247 : vector<8x32xf32>
    %250 = arith.divf %248, %249 : vector<8x32xf32>
    %251 = vector.extract_strided_slice %242 {offsets = [0, 32], sizes = [8, 32], strides = [1, 1]} : vector<8x96xf32> to vector<8x32xf32>
    %252 = vector.extract_strided_slice %239 {offsets = [0, 32], sizes = [8, 32], strides = [1, 1]} : vector<8x96xf32> to vector<8x32xf32>
    %253 = arith.addf %251, %252 : vector<8x32xf32>
    %254 = arith.negf %253 : vector<8x32xf32>
    %255 = math.exp %254 : vector<8x32xf32>
    %cst_59 = arith.constant 1.000000e+00 : f32
    %256 = vector.broadcast %cst_59 : f32 to vector<8x32xf32>
    %257 = arith.addf %256, %255 : vector<8x32xf32>
    %258 = arith.divf %256, %257 : vector<8x32xf32>
    %259 = vector.extract_strided_slice %242 {offsets = [0, 64], sizes = [8, 32], strides = [1, 1]} : vector<8x96xf32> to vector<8x32xf32>
    %260 = vector.extract_strided_slice %239 {offsets = [0, 64], sizes = [8, 32], strides = [1, 1]} : vector<8x96xf32> to vector<8x32xf32>
    %261 = arith.addf %260, %6 : vector<8x32xf32>
    %262 = arith.mulf %250, %261 : vector<8x32xf32>
    %263 = arith.addf %259, %262 : vector<8x32xf32>
    %264 = math.tanh %263 : vector<8x32xf32>
    %265 = arith.subf %234, %264 : vector<8x32xf32>
    %266 = arith.mulf %258, %265 : vector<8x32xf32>
    %267 = arith.addf %264, %266 : vector<8x32xf32>
    %268 = arith.index_cast %c7_i32 : i32 to index
    %c0_60 = arith.constant 0 : index
    %c0_61 = arith.constant 0 : index
    %269 = vector.load %arg6[%268, %c0_60, %c0_61] : memref<8x8x32xf32, #tpu.memory_space<vmem>>, vector<1x8x32xf32>
    %270 = vector.shape_cast %269 : vector<1x8x32xf32> to vector<8x32xf32>
    %271 = vector.shape_cast %267 : vector<8x32xf32> to vector<1x8x32xf32>
    tpu.vector_store %arg6[%268, %c0_60, %c0_61], %271 {strides = array<i32>} : memref<8x8x32xf32, #tpu.memory_space<vmem>>, vector<1x8x32xf32>,
    %c8_i32 = arith.constant 8 : i32
    %c0_62 = arith.constant 0 : index
    %c0_63 = arith.constant 0 : index
    %272 = vector.load %arg7[%c0_62, %c0_63] : memref<8x32xf32, #tpu.memory_space<vmem>>, vector<8x32xf32>
    tpu.vector_store %arg7[%c0_62, %c0_63], %267 {strides = array<i32>} : memref<8x32xf32, #tpu.memory_space<vmem>>, vector<8x32xf32>,
    return
  }
  func.func @transform_0(%arg0: i32, %arg1: i32) -> (i32, i32, i32) {
    %c0_i32 = arith.constant 0 : i32
    %c0_i32_0 = arith.constant 0 : i32
    return %arg1, %arg0, %c0_i32 : i32, i32, i32
  }
  func.func @transform_1(%arg0: i32, %arg1: i32) -> (i32, i32) {
    %c0_i32 = arith.constant 0 : i32
    %c0_i32_0 = arith.constant 0 : i32
    return %arg0, %c0_i32 : i32, i32
  }
  func.func @transform_2(%arg0: i32, %arg1: i32) -> (i32, i32) {
    %c0_i32 = arith.constant 0 : i32
    %c0_i32_0 = arith.constant 0 : i32
    %c0_i32_1 = arith.constant 0 : i32
    return %c0_i32, %c0_i32_0 : i32, i32
  }
  func.func @transform_3(%arg0: i32, %arg1: i32) -> (i32, i32) {
    %c0_i32 = arith.constant 0 : i32
    %c0_i32_0 = arith.constant 0 : i32
    %c0_i32_1 = arith.constant 0 : i32
    return %c0_i32, %c0_i32_0 : i32, i32
  }
  func.func @transform_4(%arg0: i32, %arg1: i32) -> (i32, i32, i32) {
    %c0_i32 = arith.constant 0 : i32
    %c0_i32_0 = arith.constant 0 : i32
    return %arg1, %arg0, %c0_i32 : i32, i32, i32
  }
}

</mosaic_0001>

<llo_original>
// kernel: tpu_custom_call.1
$region0: #{tpu_custom_call.1}
  #allocation0 [shape = 'u32[]', space=smem, size = 0x4, offset = 0x4, fixed_abs, tag = 'smem constant byte address 0x4 - core index']
  #allocation1 [shape = 'u32[144,128]{1,0:T(1,128)}', space=vmem, size = 0x12000, scoped, tag = 'internal scratch']
  #allocation2 [shape = 'f32[8,32]{1,0:T(8,128)}', space=vmem, size = 0x1000, scoped, tag = 'scratch operand']
  %s0 = inlined_call_operand.hbm [shape: f32[16,16,96], index: 0, kind: input, shape index: {}]
  %s1 = inlined_call_operand.hbm [shape: f32[16,32], index: 1, kind: input, shape index: {}]
  %s2 = inlined_call_operand.hbm [shape: f32[32,96], index: 2, kind: input, shape index: {}]
  %s3 = inlined_call_operand.vmem [shape: f32[1,32], index: 3, kind: input, shape index: {}]
  %s4 = inlined_call_operand.hbm [shape: f32[16,16,32], index: 4, kind: output, shape index: {}]
  %s5 = sld [smem:[#allocation0]]
  $region65: #{tpu_custom_call.1} parent=0
    _
  %s7 = ssub.s32 1, %s5
  %s8 = scalar_select 0, %s7, %s5
  $region1: #{tpu_custom_call.1} parent=0
    #allocation3 [shape = 'u8[65536]{0}', space=vmem, size = 0x10000, scoped, tag = 'input window, operand 0']
    #allocation4 [shape = 's32[2]{0}', space=sflag, size = 0x8, scoped, tag = 'scoped memory for tpu_custom_call.1']
    #allocation5 [shape = 's32[2]{0}', space=sflag, size = 0x8, scoped, tag = 'scoped memory for tpu_custom_call.1']
    #allocation6 [shape = 'u8[8192]{0}', space=vmem, size = 0x2000, scoped, tag = 'input window, operand 1']
    #allocation7 [shape = 's32[2]{0}', space=sflag, size = 0x8, scoped, tag = 'scoped memory for tpu_custom_call.1']
    #allocation8 [shape = 'u8[16384]{0}', space=vmem, size = 0x4000, scoped, tag = 'input window, operand 2, single buffered']
    #allocation9 [shape = 'u8[65536]{0}', space=vmem, size = 0x10000, scoped, tag = 'output window, operand 0']
    %9 = vsyncpa [#allocation4], 0
    %s10 = scalar_lea.sflag [#allocation4], 1
    %11 = vsyncpa %s10, 0
    %12 = vsyncpa [#allocation7], 0
    %s13 = scalar_lea.sflag [#allocation7], 1
    %14 = vsyncpa %s13, 0
    %15 = vsyncpa [#allocation5], 0
    %s16 = scalar_lea.sflag [#allocation5], 1
    %17 = vsyncpa %s16, 0
    loop: start=0, step=1, limit=6
    $region2: #{tpu_custom_call.1} parent=1 // loop_pre_header
      _
    $region3: #{tpu_custom_call.1} parent=1 // loop_header
      %s19 = sphi 0, %s23
      %p20 = scmp.ge.s32.totalorder %s19, 6
      %s26 = sphi 0, %s38
      %s27 = sphi 0, %s34
      %s28 = sphi 0, %s26
      %s29 = sphi 0, %s27
      %s30 = sphi 0, %s28
      %s31 = sphi 0, %s29
      %s43 = sphi 0, %s45
      %s46 = sphi 0, %s43
      %s47 = sphi 0, %s46
      %s63 = sphi 0, %s47
      %s69 = sphi 0, %s71
      %s72 = sphi 0, %s69
      %s73 = sphi 0, %s72
      %s89 = sphi 0, %s73
      %s93 = sphi 0, %s93
      %s95 = sphi 0, %s93
      %s96 = sphi 0, %s95
      %s110 = sphi 0, %s96
      %s114 = sphi 0, %s114
      %s116 = sphi 0, %s114
      %s117 = sphi 0, %s116
      %s131 = sphi 0, %s117
      %s139 = sphi 0, %s141
      %s142 = sphi 0, %s139
      %s143 = sphi 0, %s142
      %s159 = sphi 0, %s143
    $region4: #{tpu_custom_call.1} parent=1 // loop_header_branch
      %22 = sbr.rel (%p20) target = $region8
    $region5: #{tpu_custom_call.1} parent=1 // loop_body
      %s24 = ssub.s32 %s19, 1
      %s25 = ssub.s32 %s19, 2
      %s32 = sadd.s32 1, %s27
      %p33 = scmp.ge.s32.totalorder %s32, 2
      %s34 = scalar_select %p33, 0, %s32
      %s35 = sadd.s32 1, %s26
      %s36 = scalar_select %p33, %s35, %s26
      %p37 = scmp.ge.s32.totalorder %s36, 2
      %s38 = scalar_select %p37, 0, %s36
      %s39 = ssub.s32 %s27, %s34
      %s40 = ssub.s32 %s26, %s38
      %s41 = sor.u32 %s39, %s40
      %p42 = scmp.eq.s32.totalorder %s41, 0
      %s44 = sadd.s32 %s43, 1
      %s45 = scalar_select %p42, %s43, %s44
      %p48 = pneg %p42
      %p49 = scmp.eq.s32.totalorder %s19, 3
      %p50 = por %p48, %p49
      %p51 = scmp.ne.s32.totalorder %s43, %s46
      %p52 = scmp.eq.s32.totalorder %s19, 0
      %p53 = por %p51, %p52
      %p54 = scmp.ne.s32.totalorder %s43, %s46
      %p55 = scmp.eq.s32.totalorder %s24, 3
      %p56 = por %p54, %p55
      %p57 = scmp.ne.s32.totalorder %s46, %s47
      %p58 = scmp.eq.s32.totalorder %s24, 0
      %p59 = por %p57, %p58
      %p60 = scmp.ne.s32.totalorder %s46, %s47
      %p61 = scmp.eq.s32.totalorder %s25, 3
      %p62 = por %p60, %p61
      %p64 = scmp.ne.s32.totalorder %s47, %s63
      %p65 = scmp.eq.s32.totalorder %s25, 0
      %p66 = por %p64, %p65
      %s67 = ssub.s32 %s26, %s38
      %p68 = scmp.eq.s32.totalorder %s67, 0
      %s70 = sadd.s32 %s69, 1
      %s71 = scalar_select %p68, %s69, %s70
      %p74 = pneg %p68
      %p75 = scmp.eq.s32.totalorder %s19, 3
      %p76 = por %p74, %p75
      %p77 = scmp.ne.s32.totalorder %s69, %s72
      %p78 = scmp.eq.s32.totalorder %s19, 0
      %p79 = por %p77, %p78
      %p80 = scmp.ne.s32.totalorder %s69, %s72
      %p81 = scmp.eq.s32.totalorder %s24, 3
      %p82 = por %p80, %p81
      %p83 = scmp.ne.s32.totalorder %s72, %s73
      %p84 = scmp.eq.s32.totalorder %s24, 0
      %p85 = por %p83, %p84
      %p86 = scmp.ne.s32.totalorder %s72, %s73
      %p87 = scmp.eq.s32.totalorder %s25, 3
      %p88 = por %p86, %p87
      %p90 = scmp.ne.s32.totalorder %s73, %s89
      %p91 = scmp.eq.s32.totalorder %s25, 0
      %p92 = por %p90, %p91
      %s94 = sadd.s32 %s93, 1
      %p97 = scmp.eq.s32.totalorder %s19, 3
      %p98 = scmp.ne.s32.totalorder %s93, %s95
      %p99 = scmp.eq.s32.totalorder %s19, 0
      %p100 = por %p98, %p99
      %p101 = scmp.ne.s32.totalorder %s93, %s95
      %p102 = scmp.eq.s32.totalorder %s24, 3
      %p103 = por %p101, %p102
      %p104 = scmp.ne.s32.totalorder %s95, %s96
      %p105 = scmp.eq.s32.totalorder %s24, 0
      %p106 = por %p104, %p105
      %p107 = scmp.ne.s32.totalorder %s95, %s96
      %p108 = scmp.eq.s32.totalorder %s25, 3
      %p109 = por %p107, %p108
      %p111 = scmp.ne.s32.totalorder %s96, %s110
      %p112 = scmp.eq.s32.totalorder %s25, 0
      %p113 = por %p111, %p112
      %s115 = sadd.s32 %s114, 1
      %p118 = scmp.eq.s32.totalorder %s19, 3
      %p119 = scmp.ne.s32.totalorder %s114, %s116
      %p120 = scmp.eq.s32.totalorder %s19, 0
      %p121 = por %p119, %p120
      %p122 = scmp.ne.s32.totalorder %s114, %s116
      %p123 = scmp.eq.s32.totalorder %s24, 3
      %p124 = por %p122, %p123
      %p125 = scmp.ne.s32.totalorder %s116, %s117
      %p126 = scmp.eq.s32.totalorder %s24, 0
      %p127 = por %p125, %p126
      %p128 = scmp.ne.s32.totalorder %s116, %s117
      %p129 = scmp.eq.s32.totalorder %s25, 3
      %p130 = por %p128, %p129
      %p132 = scmp.ne.s32.totalorder %s117, %s131
      %p133 = scmp.eq.s32.totalorder %s25, 0
      %p134 = por %p132, %p133
      %s135 = ssub.s32 %s27, %s34
      %s136 = ssub.s32 %s26, %s38
      %s137 = sor.u32 %s135, %s136
      %p138 = scmp.eq.s32.totalorder %s137, 0
      %s140 = sadd.s32 %s139, 1
      %s141 = scalar_select %p138, %s139, %s140
      %p144 = pneg %p138
      %p145 = scmp.eq.s32.totalorder %s19, 3
      %p146 = por %p144, %p145
      %p147 = scmp.ne.s32.totalorder %s139, %s142
      %p148 = scmp.eq.s32.totalorder %s19, 0
      %p149 = por %p147, %p148
      %p150 = scmp.ne.s32.totalorder %s139, %s142
      %p151 = scmp.eq.s32.totalorder %s24, 3
      %p152 = por %p150, %p151
      %p153 = scmp.ne.s32.totalorder %s142, %s143
      %p154 = scmp.eq.s32.totalorder %s24, 0
      %p155 = por %p153, %p154
      %p156 = scmp.ne.s32.totalorder %s142, %s143
      %p157 = scmp.eq.s32.totalorder %s25, 3
      %p158 = por %p156, %p157
      %p160 = scmp.ne.s32.totalorder %s143, %s159
      %p161 = scmp.eq.s32.totalorder %s25, 0
      %p162 = por %p160, %p161
      %p163 = scmp.le.s32.totalorder 1, %s19
      %p164 = scmp.lt.s32.totalorder %s19, 5
      %p165 = pnand %p163, %p164
      %p166 = pneg %p165
      // Predicated region
      $region9: #{tpu_custom_call.1} parent=5 // pred_check
        _
      $region10: #{tpu_custom_call.1} parent=5 // pred_check_branch
        %168 = sbr.rel (%p165) target = $region12
      $region11: #{tpu_custom_call.1} parent=5 // pred_region
        %s169 = ssub.s32 %s19, 1
        // Predicated region
        $region13: #{tpu_custom_call.1} parent=11 // pred_check
          %p170 = pneg %p106
        $region14: #{tpu_custom_call.1} parent=11 // pred_check_branch
          %172 = sbr.rel (%p170) target = $region16
        $region15: #{tpu_custom_call.1} parent=11 // pred_region
          %s174 = ssub.s32 512, 512
          %175 = vsyncadd [#allocation7], %s174
          %s176 = sshll.u32 [#allocation8], 4
          %s177 = int_to_ptr.vmem [resolvable:$true] %s176
          %182 = dma.hbm_to_vmem [thread:$0]  %s2, 512, %s177, [#allocation7], 128, 128, 8
        $region16: #{tpu_custom_call.1} parent=11 // pred_fallthru
          _
        // Predicated region
        $region17: #{tpu_custom_call.1} parent=11 // pred_check
          %p183 = pneg %p127
        $region18: #{tpu_custom_call.1} parent=11 // pred_check_branch
          %185 = sbr.rel (%p183) target = $region20
        $region19: #{tpu_custom_call.1} parent=11 // pred_region
          _
        $region20: #{tpu_custom_call.1} parent=11 // pred_fallthru
          _
      $region12: #{tpu_custom_call.1} parent=5 // pred_fallthru
        _
      %p186 = scmp.lt.s32.totalorder %s19, 4
      // Predicated region
      $region21: #{tpu_custom_call.1} parent=5 // pred_check
        %p187 = pneg %p186
      $region22: #{tpu_custom_call.1} parent=5 // pred_check_branch
        %189 = sbr.rel (%p187) target = $region24
      $region23: #{tpu_custom_call.1} parent=5 // pred_region
        // Predicated region
        $region25: #{tpu_custom_call.1} parent=23 // pred_check
          %p190 = pneg %p53
        $region26: #{tpu_custom_call.1} parent=23 // pred_check_branch
          %192 = sbr.rel (%p190) target = $region28
        $region27: #{tpu_custom_call.1} parent=23 // pred_region
          %s193 = sand.u32 %s43, 1
          %s194 = scalar_lea.sflag [#allocation4], %s193
          %s195 = sand.u32 %s43, 1
          %s196 = smul.addr %s195, 64
          %s197 = scalar_lea.vmem [#allocation3], %s196
          %s198 = smul.u32 8, %s27
          %s200 = ssub.s32 1024, 1024
          %201 = vsyncadd %s194, %s200
          %s202 = smul.addr %s198, 2
          %s203 = sadd.s32 %s26, %s202
          %s204 = smul.addr %s203, 128
          %s205 = scalar_lea.hbm %s0, %s204
          %s206 = sshll.u32 %s197, 4
          %s207 = int_to_ptr.vmem [resolvable:$true] %s206
          %212 = dma.hbm_to_vmem [thread:$0]  %s205, 1024, %s207, %s194, 256, 128, 8
        $region28: #{tpu_custom_call.1} parent=23 // pred_fallthru
          _
        // Predicated region
        $region29: #{tpu_custom_call.1} parent=23 // pred_check
          %p213 = pneg %p79
        $region30: #{tpu_custom_call.1} parent=23 // pred_check_branch
          %215 = sbr.rel (%p213) target = $region32
        $region31: #{tpu_custom_call.1} parent=23 // pred_region
          %s216 = sand.u32 %s19, 1
          %s217 = scalar_lea.sflag [#allocation7], %s216
          %s218 = sand.u32 %s69, 1
          %s219 = smul.addr %s218, 8
          %s220 = scalar_lea.vmem [#allocation6], %s219
          %s222 = ssub.s32 128, 128
          %223 = vsyncadd %s217, %s222
          %s224 = smul.addr %s26, 128
          %s225 = scalar_lea.hbm %s1, %s224
          %s227 = sshll.u32 %s220, 4
          %s228 = int_to_ptr.vmem [resolvable:$true] %s227
          %230 = dma.hbm_to_vmem [thread:$0]  %s225, 128, %s228, %s217
        $region32: #{tpu_custom_call.1} parent=23 // pred_fallthru
          _
      $region24: #{tpu_custom_call.1} parent=5 // pred_fallthru
        _
      %p231 = scmp.le.s32.totalorder 1, %s19
      %p232 = scmp.lt.s32.totalorder %s19, 5
      %p233 = pnand %p231, %p232
      %p234 = pneg %p233
      // Predicated region
      $region33: #{tpu_custom_call.1} parent=5 // pred_check
        _
      $region34: #{tpu_custom_call.1} parent=5 // pred_check_branch
        %236 = sbr.rel (%p233) target = $region36
      $region35: #{tpu_custom_call.1} parent=5 // pred_region
        %s237 = ssub.s32 %s19, 1
        %s238 = sand.u32 %s46, 1
        %s239 = scalar_lea.sflag [#allocation4], %s238
        %s240 = sand.u32 %s46, 1
        %s241 = smul.addr %s240, 64
        %s242 = scalar_lea.vmem [#allocation3], %s241
        // Predicated region
        $region37: #{tpu_custom_call.1} parent=35 // pred_check
          %p243 = pneg %p59
        $region38: #{tpu_custom_call.1} parent=35 // pred_check_branch
          %245 = sbr.rel (%p243) target = $region40
        $region39: #{tpu_custom_call.1} parent=35 // pred_region
          %246 = dma.done %s239, 1024
        $region40: #{tpu_custom_call.1} parent=35 // pred_fallthru
          _
        %s247 = sand.u32 %s24, 1
        %s248 = scalar_lea.sflag [#allocation7], %s247
        %s249 = sand.u32 %s72, 1
        %s250 = smul.addr %s249, 8
        %s251 = scalar_lea.vmem [#allocation6], %s250
        // Predicated region
        $region41: #{tpu_custom_call.1} parent=35 // pred_check
          %p252 = pneg %p85
        $region42: #{tpu_custom_call.1} parent=35 // pred_check_branch
          %254 = sbr.rel (%p252) target = $region44
        $region43: #{tpu_custom_call.1} parent=35 // pred_region
          %255 = dma.done %s248, 128
        $region44: #{tpu_custom_call.1} parent=35 // pred_fallthru
          _
        // Predicated region
        $region45: #{tpu_custom_call.1} parent=35 // pred_check
          %p256 = pneg %p106
        $region46: #{tpu_custom_call.1} parent=35 // pred_check_branch
          %258 = sbr.rel (%p256) target = $region48
        $region47: #{tpu_custom_call.1} parent=35 // pred_region
          %259 = dma.done [#allocation7], 512
        $region48: #{tpu_custom_call.1} parent=35 // pred_fallthru
          _
        %s260 = sand.u32 %s46, 1
        %s261 = scalar_lea.sflag [#allocation4], %s260
        %s262 = sand.u32 %s46, 1
        %s263 = smul.addr %s262, 64
        %s264 = scalar_lea.vmem [#allocation3], %s263
        %p265 = pneg %p59
        %p266 = pneg %p56
        %s267 = sand.u32 %s24, 1
        %s268 = scalar_lea.sflag [#allocation7], %s267
        %s269 = sand.u32 %s72, 1
        %s270 = smul.addr %s269, 8
        %s271 = scalar_lea.vmem [#allocation6], %s270
        %p272 = pneg %p85
        %p273 = pneg %p82
        %p274 = pneg %p106
        %p275 = pneg %p103
        %p276 = pneg %p127
        %p277 = pneg %p124
        %p278 = pneg %p155
        %p279 = pneg %p152
        %s280 = sand.u32 %s142, 1
        %s281 = scalar_lea.sflag [#allocation5], %s280
        %s282 = sand.u32 %s142, 1
        %s283 = smul.addr %s282, 64
        %s284 = scalar_lea.vmem [#allocation9], %s283
        %s285 = smul.u32 8, %s29
        %s286 = smul.u32 8, %s29
        %p287 = scmp.eq.s32.totalorder %s29, 0
        // Predicated region
        $region49: #{tpu_custom_call.1} parent=35 // pred_check
          %p288 = pneg %p287
        $region50: #{tpu_custom_call.1} parent=35 // pred_check_branch
          %290 = sbr.rel (%p288) target = $region52
        $region51: #{tpu_custom_call.1} parent=35 // pred_region
          %v291 = vld [vmem:[%s251] sm:$0xff]
          %vm292 = vcmask 261120
          %293 = vst.msk [vmem:[#allocation2] sm:$0xff] %vm292, %v291
        $region52: #{tpu_custom_call.1} parent=35 // pred_fallthru
          _
        %v294 = vld [vmem:[#allocation8] sm:$0xff]
        %v295 = vld [vmem:[#allocation8 + $0x8] sm:$0xff]
        %v296 = vld [vmem:[#allocation8 + $0x10] sm:$0xff]
        %v297 = vld [vmem:[#allocation8 + $0x18] sm:$0xff]
        %v298 = vld [vmem:[%s3] sm:$0x1]
        %v300 = vlaneseq
        %v301 = vshrl.u32 %v300, 7
        %v302 = vsub.s32 0, %v301
        %v303 = vrot.slane %v298, %v302
        %v304 = vld [vmem:[#allocation2] sm:$0xff]
        %vm305 = vcmask 261120
        %v307 = vsel %vm305, %v304, 0
        %309 = vmatprep.subr.mxu0 0.0
        %310 = vmatpush1.msra.mxu0 %v294
        %311 = vmatprep.subr.mxu0 0.0
        %312 = vmatpush1.msra.mxu0 %v295
        %313 = vmatprep.subr.mxu0 0.0
        %314 = vmatpush1.msra.mxu0 %v296
        %315 = vmatprep.subr.mxu0 0.0
        %316 = vmatpush1.msra.mxu0 %v297
        %317 = vmatprep.subr.mxu0 0.0
        %318 = vmatpush1.msra.mxu0 0.0
        %319 = vmatprep.subr.mxu0 0.0
        %320 = vmatpush1.msra.mxu0 0.0
        %321 = vmatprep.subr.mxu0 0.0
        %322 = vmatpush1.msra.mxu0 0.0
        %323 = vmatprep.subr.mxu0 0.0
        %324 = vmatpush1.msra.mxu0 0.0
        %325 = vmatprep.subr.mxu0 0.0
        %326 = vmatpush1.msra.mxu0 0.0
        %327 = vmatprep.subr.mxu0 0.0
        %328 = vmatpush1.msra.mxu0 0.0
        %329 = vmatprep.subr.mxu0 0.0
        %330 = vmatpush1.msra.mxu0 0.0
        %331 = vmatprep.subr.mxu0 0.0
        %332 = vmatpush1.msra.mxu0 0.0
        %333 = vmatprep.subr.mxu0 0.0
        %334 = vmatpush1.msra.mxu0 0.0
        %335 = vmatprep.subr.mxu0 0.0
        %336 = vmatpush1.msra.mxu0 0.0
        %337 = vmatprep.subr.mxu0 0.0
        %338 = vmatpush1.msra.mxu0 0.0
        %339 = vmatprep.subr.mxu0 0.0
        %340 = vmatpush1.msra.mxu0 0.0
        %341 = vmatprep.subr.mxu0 0.0
        %342 = vmatpush1.msra.mxu0 0.0
        %343 = vmatprep.subr.mxu0 0.0
        %344 = vmatpush1.msra.mxu0 0.0
        %345 = vmatprep.subr.mxu0 0.0
        %346 = vmatpush1.msra.mxu0 0.0
        %347 = vmatprep.subr.mxu0 0.0
        %348 = vmatpush1.msra.mxu0 0.0
        %349 = vmatprep.subr.mxu0 0.0
        %350 = vmatpush1.msra.mxu0 0.0
        %351 = vmatprep.subr.mxu0 0.0
        %352 = vmatpush1.msra.mxu0 0.0
        %353 = vmatprep.subr.mxu0 0.0
        %354 = vmatpush1.msra.mxu0 0.0
        %355 = vmatprep.subr.mxu0 0.0
        %356 = vmatpush1.msra.mxu0 0.0
        %357 = vmatprep.subr.mxu0 0.0
        %358 = vmatpush1.msra.mxu0 0.0
        %359 = vmatprep.subr.mxu0 0.0
        %360 = vmatpush1.msra.mxu0 0.0
        %361 = vmatprep.subr.mxu0 0.0
        %362 = vmatpush1.msra.mxu0 0.0
        %363 = vmatprep.subr.mxu0 0.0
        %364 = vmatpush1.msra.mxu0 0.0
        %365 = vmatprep.subr.mxu0 0.0
        %366 = vmatpush1.msra.mxu0 0.0
        %367 = vmatprep.subr.mxu0 0.0
        %368 = vmatpush1.msra.mxu0 0.0
        %369 = vmatprep.subr.mxu0 0.0
        %370 = vmatpush1.msra.mxu0 0.0
        %371 = vmatprep.subr.mxu0 0.0
        %372 = vmatpush1.msra.mxu0 0.0
        %373 = vmatprep.mubr.f32.mxu0 0.0
        %374 = vmatmul.mubr.f32.gmra.mrb[0].mxu0 %v307
        %v375 = vpop.f32.mrb[0].mxu0
        %v376 = vadd.f32 0.0, %v375
        %v377 = vpop.f32.mrb[0].mxu0
        %378 = vdwg.mxu0
        %v379 = vld [vmem:[%s242] sm:$0xff]
        %v380 = vadd.f32 %v379, %v376
        %v381 = vxor.u32 %v380, 2147483648
        %v382 = vmul.f32 %v381, 1.442695
        %v383 = vpow.pop %v382
        %v384 = vadd.f32 %v383, 1.0
        %v385 = vrcp.pop %v384
        %v386 = vmul.f32 1.0, %v385
        %387 = vrot.lane.b32.xlu0 %v303, 64
        %v388 = vpop.permute.xlu0 %387
        %v390 = vadd.f32 %v376, %v388
        %392 = vrot.lane.b32.xlu0 %v390, 64
        %v393 = vpop.permute.xlu0 %392
        %v395 = vmul.f32 %v386, %v393
        %397 = vrot.lane.b32.xlu0 %v395, 64
        %v398 = vpop.permute.xlu0 %397
        %v400 = vadd.f32 %v379, %v398
        %v401 = vtanh.pop %v400
        %403 = vrot.lane.b32.xlu0 %v401, 64
        %v404 = vpop.permute.xlu0 %403
        %v406 = vsub.f32 %v304, %v404
        %408 = vrot.lane.b32.xlu0 %v406, 32
        %v409 = vpop.permute.xlu0 %408
        %v411 = vmul.f32 %v386, %v409
        %413 = vrot.lane.b32.xlu0 %v411, 32
        %v414 = vpop.permute.xlu0 %413
        %v416 = vadd.f32 %v401, %v414
        %418 = vrot.lane.b32.xlu0 %v416, 64
        %v419 = vpop.permute.xlu0 %418
        %421 = vst.msk [vmem:[%s284] sm:$0xff] %vm305, %v419
        %v422 = vsel %vm305, %v419, 0
        %424 = vmatprep.subr.mxu0 0.0
        %425 = vmatpush1.msra.mxu0 %v294
        %426 = vmatprep.subr.mxu0 0.0
        %427 = vmatpush1.msra.mxu0 %v295
        %428 = vmatprep.subr.mxu0 0.0
        %429 = vmatpush1.msra.mxu0 %v296
        %430 = vmatprep.subr.mxu0 0.0
        %431 = vmatpush1.msra.mxu0 %v297
        %432 = vmatprep.subr.mxu0 0.0
        %433 = vmatpush1.msra.mxu0 0.0
        %434 = vmatprep.subr.mxu0 0.0
        %435 = vmatpush1.msra.mxu0 0.0
        %436 = vmatprep.subr.mxu0 0.0
        %437 = vmatpush1.msra.mxu0 0.0
        %438 = vmatprep.subr.mxu0 0.0
        %439 = vmatpush1.msra.mxu0 0.0
        %440 = vmatprep.subr.mxu0 0.0
        %441 = vmatpush1.msra.mxu0 0.0
        %442 = vmatprep.subr.mxu0 0.0
        %443 = vmatpush1.msra.mxu0 0.0
        %444 = vmatprep.subr.mxu0 0.0
        %445 = vmatpush1.msra.mxu0 0.0
        %446 = vmatprep.subr.mxu0 0.0
        %447 = vmatpush1.msra.mxu0 0.0
        %448 = vmatprep.subr.mxu0 0.0
        %449 = vmatpush1.msra.mxu0 0.0
        %450 = vmatprep.subr.mxu0 0.0
        %451 = vmatpush1.msra.mxu0 0.0
        %452 = vmatprep.subr.mxu0 0.0
        %453 = vmatpush1.msra.mxu0 0.0
        %454 = vmatprep.subr.mxu0 0.0
        %455 = vmatpush1.msra.mxu0 0.0
        %456 = vmatprep.subr.mxu0 0.0
        %457 = vmatpush1.msra.mxu0 0.0
        %458 = vmatprep.subr.mxu0 0.0
        %459 = vmatpush1.msra.mxu0 0.0
        %460 = vmatprep.subr.mxu0 0.0
        %461 = vmatpush1.msra.mxu0 0.0
        %462 = vmatprep.subr.mxu0 0.0
        %463 = vmatpush1.msra.mxu0 0.0
        %464 = vmatprep.subr.mxu0 0.0
        %465 = vmatpush1.msra.mxu0 0.0
        %466 = vmatprep.subr.mxu0 0.0
        %467 = vmatpush1.msra.mxu0 0.0
        %468 = vmatprep.subr.mxu0 0.0
        %469 = vmatpush1.msra.mxu0 0.0
        %470 = vmatprep.subr.mxu0 0.0
        %471 = vmatpush1.msra.mxu0 0.0
        %472 = vmatprep.subr.mxu0 0.0
        %473 = vmatpush1.msra.mxu0 0.0
        %474 = vmatprep.subr.mxu0 0.0
        %475 = vmatpush1.msra.mxu0 0.0
        %476 = vmatprep.subr.mxu0 0.0
        %477 = vmatpush1.msra.mxu0 0.0
        %478 = vmatprep.subr.mxu0 0.0
        %479 = vmatpush1.msra.mxu0 0.0
        %480 = vmatprep.subr.mxu0 0.0
        %481 = vmatpush1.msra.mxu0 0.0
        %482 = vmatprep.subr.mxu0 0.0
        %483 = vmatpush1.msra.mxu0 0.0
        %484 = vmatprep.subr.mxu0 0.0
        %485 = vmatpush1.msra.mxu0 0.0
        %486 = vmatprep.subr.mxu0 0.0
        %487 = vmatpush1.msra.mxu0 0.0
        %488 = vmatprep.mubr.f32.mxu0 0.0
        %489 = vmatmul.mubr.f32.gmra.mrb[0].mxu0 %v422
        %v490 = vpop.f32.mrb[0].mxu0
        %v491 = vadd.f32 0.0, %v490
        %v492 = vpop.f32.mrb[0].mxu0
        %493 = vdwg.mxu0
        %s494 = scalar_lea.vmem %s242, 8 [#allocation3]
        %v495 = vld [vmem:[%s494] sm:$0xff]
        %v496 = vadd.f32 %v495, %v491
        %v497 = vxor.u32 %v496, 2147483648
        %v498 = vmul.f32 %v497, 1.442695
        %v499 = vpow.pop %v498
        %v500 = vadd.f32 %v499, 1.0
        %v501 = vrcp.pop %v500
        %v502 = vmul.f32 1.0, %v501
        %v503 = vadd.f32 %v491, %v388
        %505 = vrot.lane.b32.xlu0 %v503, 64
        %v506 = vpop.permute.xlu0 %505
        %v508 = vmul.f32 %v502, %v506
        %510 = vrot.lane.b32.xlu0 %v508, 64
        %v511 = vpop.permute.xlu0 %510
        %v513 = vadd.f32 %v495, %v511
        %v514 = vtanh.pop %v513
        %v515 = vsub.f32 %v416, %v514
        %517 = vrot.lane.b32.xlu0 %v515, 96
        %v518 = vpop.permute.xlu0 %517
        %v520 = vmul.f32 %v502, %v518
        %522 = vrot.lane.b32.xlu0 %v520, 32
        %v523 = vpop.permute.xlu0 %522
        %v525 = vadd.f32 %v514, %v523
        %527 = vrot.lane.b32.xlu0 %v525, 64
        %v528 = vpop.permute.xlu0 %527
        %s530 = scalar_lea.vmem %s284, 8 [#allocation9]
        %531 = vst.msk [vmem:[%s530] sm:$0xff] %vm305, %v528
        %v532 = vsel %vm305, %v528, 0
        %534 = vmatprep.subr.mxu0 0.0
        %535 = vmatpush1.msra.mxu0 %v294
        %536 = vmatprep.subr.mxu0 0.0
        %537 = vmatpush1.msra.mxu0 %v295
        %538 = vmatprep.subr.mxu0 0.0
        %539 = vmatpush1.msra.mxu0 %v296
        %540 = vmatprep.subr.mxu0 0.0
        %541 = vmatpush1.msra.mxu0 %v297
        %542 = vmatprep.subr.mxu0 0.0
        %543 = vmatpush1.msra.mxu0 0.0
        %544 = vmatprep.subr.mxu0 0.0
        %545 = vmatpush1.msra.mxu0 0.0
        %546 = vmatprep.subr.mxu0 0.0
        %547 = vmatpush1.msra.mxu0 0.0
        %548 = vmatprep.subr.mxu0 0.0
        %549 = vmatpush1.msra.mxu0 0.0
        %550 = vmatprep.subr.mxu0 0.0
        %551 = vmatpush1.msra.mxu0 0.0
        %552 = vmatprep.subr.mxu0 0.0
        %553 = vmatpush1.msra.mxu0 0.0
        %554 = vmatprep.subr.mxu0 0.0
        %555 = vmatpush1.msra.mxu0 0.0
        %556 = vmatprep.subr.mxu0 0.0
        %557 = vmatpush1.msra.mxu0 0.0
        %558 = vmatprep.subr.mxu0 0.0
        %559 = vmatpush1.msra.mxu0 0.0
        %560 = vmatprep.subr.mxu0 0.0
        %561 = vmatpush1.msra.mxu0 0.0
        %562 = vmatprep.subr.mxu0 0.0
        %563 = vmatpush1.msra.mxu0 0.0
        %564 = vmatprep.subr.mxu0 0.0
        %565 = vmatpush1.msra.mxu0 0.0
        %566 = vmatprep.subr.mxu0 0.0
        %567 = vmatpush1.msra.mxu0 0.0
        %568 = vmatprep.subr.mxu0 0.0
        %569 = vmatpush1.msra.mxu0 0.0
        %570 = vmatprep.subr.mxu0 0.0
        %571 = vmatpush1.msra.mxu0 0.0
        %572 = vmatprep.subr.mxu0 0.0
        %573 = vmatpush1.msra.mxu0 0.0
        %574 = vmatprep.subr.mxu0 0.0
        %575 = vmatpush1.msra.mxu0 0.0
        %576 = vmatprep.subr.mxu0 0.0
        %577 = vmatpush1.msra.mxu0 0.0
        %578 = vmatprep.subr.mxu0 0.0
        %579 = vmatpush1.msra.mxu0 0.0
        %580 = vmatprep.subr.mxu0 0.0
        %581 = vmatpush1.msra.mxu0 0.0
        %582 = vmatprep.subr.mxu0 0.0
        %583 = vmatpush1.msra.mxu0 0.0
        %584 = vmatprep.subr.mxu0 0.0
        %585 = vmatpush1.msra.mxu0 0.0
        %586 = vmatprep.subr.mxu0 0.0
        %587 = vmatpush1.msra.mxu0 0.0
        %588 = vmatprep.subr.mxu0 0.0
        %589 = vmatpush1.msra.mxu0 0.0
        %590 = vmatprep.subr.mxu0 0.0
        %591 = vmatpush1.msra.mxu0 0.0
        %592 = vmatprep.subr.mxu0 0.0
        %593 = vmatpush1.msra.mxu0 0.0
        %594 = vmatprep.subr.mxu0 0.0
        %595 = vmatpush1.msra.mxu0 0.0
        %596 = vmatprep.subr.mxu0 0.0
        %597 = vmatpush1.msra.mxu0 0.0
        %598 = vmatprep.mubr.f32.mxu0 0.0
        %599 = vmatmul.mubr.f32.gmra.mrb[0].mxu0 %v532
        %v600 = vpop.f32.mrb[0].mxu0
        %v601 = vadd.f32 0.0, %v600
        %v602 = vpop.f32.mrb[0].mxu0
        %603 = vdwg.mxu0
        %s604 = scalar_lea.vmem %s242, 16 [#allocation3]
        %v605 = vld [vmem:[%s604] sm:$0xff]
        %v606 = vadd.f32 %v605, %v601
        %v607 = vxor.u32 %v606, 2147483648
        %v608 = vmul.f32 %v607, 1.442695
        %v609 = vpow.pop %v608
        %v610 = vadd.f32 %v609, 1.0
        %v611 = vrcp.pop %v610
        %v612 = vmul.f32 1.0, %v611
        %v613 = vadd.f32 %v601, %v388
        %615 = vrot.lane.b32.xlu0 %v613, 64
        %v616 = vpop.permute.xlu0 %615
        %v618 = vmul.f32 %v612, %v616
        %620 = vrot.lane.b32.xlu0 %v618, 64
        %v621 = vpop.permute.xlu0 %620
        %v623 = vadd.f32 %v605, %v621
        %v624 = vtanh.pop %v623
        %v625 = vsub.f32 %v525, %v624
        %627 = vrot.lane.b32.xlu0 %v625, 96
        %v628 = vpop.permute.xlu0 %627
        %v630 = vmul.f32 %v612, %v628
        %632 = vrot.lane.b32.xlu0 %v630, 32
        %v633 = vpop.permute.xlu0 %632
        %v635 = vadd.f32 %v624, %v633
        %637 = vrot.lane.b32.xlu0 %v635, 64
        %v638 = vpop.permute.xlu0 %637
        %s640 = scalar_lea.vmem %s284, 16 [#allocation9]
        %641 = vst.msk [vmem:[%s640] sm:$0xff] %vm305, %v638
        %v642 = vsel %vm305, %v638, 0
        %644 = vmatprep.subr.mxu0 0.0
        %645 = vmatpush1.msra.mxu0 %v294
        %646 = vmatprep.subr.mxu0 0.0
        %647 = vmatpush1.msra.mxu0 %v295
        %648 = vmatprep.subr.mxu0 0.0
        %649 = vmatpush1.msra.mxu0 %v296
        %650 = vmatprep.subr.mxu0 0.0
        %651 = vmatpush1.msra.mxu0 %v297
        %652 = vmatprep.subr.mxu0 0.0
        %653 = vmatpush1.msra.mxu0 0.0
        %654 = vmatprep.subr.mxu0 0.0
        %655 = vmatpush1.msra.mxu0 0.0
        %656 = vmatprep.subr.mxu0 0.0
        %657 = vmatpush1.msra.mxu0 0.0
        %658 = vmatprep.subr.mxu0 0.0
        %659 = vmatpush1.msra.mxu0 0.0
        %660 = vmatprep.subr.mxu0 0.0
        %661 = vmatpush1.msra.mxu0 0.0
        %662 = vmatprep.subr.mxu0 0.0
        %663 = vmatpush1.msra.mxu0 0.0
        %664 = vmatprep.subr.mxu0 0.0
        %665 = vmatpush1.msra.mxu0 0.0
        %666 = vmatprep.subr.mxu0 0.0
        %667 = vmatpush1.msra.mxu0 0.0
        %668 = vmatprep.subr.mxu0 0.0
        %669 = vmatpush1.msra.mxu0 0.0
        %670 = vmatprep.subr.mxu0 0.0
        %671 = vmatpush1.msra.mxu0 0.0
        %672 = vmatprep.subr.mxu0 0.0
        %673 = vmatpush1.msra.mxu0 0.0
        %674 = vmatprep.subr.mxu0 0.0
        %675 = vmatpush1.msra.mxu0 0.0
        %676 = vmatprep.subr.mxu0 0.0
        %677 = vmatpush1.msra.mxu0 0.0
        %678 = vmatprep.subr.mxu0 0.0
        %679 = vmatpush1.msra.mxu0 0.0
        %680 = vmatprep.subr.mxu0 0.0
        %681 = vmatpush1.msra.mxu0 0.0
        %682 = vmatprep.subr.mxu0 0.0
        %683 = vmatpush1.msra.mxu0 0.0
        %684 = vmatprep.subr.mxu0 0.0
        %685 = vmatpush1.msra.mxu0 0.0
        %686 = vmatprep.subr.mxu0 0.0
        %687 = vmatpush1.msra.mxu0 0.0
        %688 = vmatprep.subr.mxu0 0.0
        %689 = vmatpush1.msra.mxu0 0.0
        %690 = vmatprep.subr.mxu0 0.0
        %691 = vmatpush1.msra.mxu0 0.0
        %692 = vmatprep.subr.mxu0 0.0
        %693 = vmatpush1.msra.mxu0 0.0
        %694 = vmatprep.subr.mxu0 0.0
        %695 = vmatpush1.msra.mxu0 0.0
        %696 = vmatprep.subr.mxu0 0.0
        %697 = vmatpush1.msra.mxu0 0.0
        %698 = vmatprep.subr.mxu0 0.0
        %699 = vmatpush1.msra.mxu0 0.0
        %700 = vmatprep.subr.mxu0 0.0
        %701 = vmatpush1.msra.mxu0 0.0
        %702 = vmatprep.subr.mxu0 0.0
        %703 = vmatpush1.msra.mxu0 0.0
        %704 = vmatprep.subr.mxu0 0.0
        %705 = vmatpush1.msra.mxu0 0.0
        %706 = vmatprep.subr.mxu0 0.0
        %707 = vmatpush1.msra.mxu0 0.0
        %708 = vmatprep.mubr.f32.mxu0 0.0
        %709 = vmatmul.mubr.f32.gmra.mrb[0].mxu0 %v642
        %v710 = vpop.f32.mrb[0].mxu0
        %v711 = vadd.f32 0.0, %v710
        %v712 = vpop.f32.mrb[0].mxu0
        %713 = vdwg.mxu0
        %s714 = scalar_lea.vmem %s242, 24 [#allocation3]
        %v715 = vld [vmem:[%s714] sm:$0xff]
        %v716 = vadd.f32 %v715, %v711
        %v717 = vxor.u32 %v716, 2147483648
        %v718 = vmul.f32 %v717, 1.442695
        %v719 = vpow.pop %v718
        %v720 = vadd.f32 %v719, 1.0
        %v721 = vrcp.pop %v720
        %v722 = vmul.f32 1.0, %v721
        %v723 = vadd.f32 %v711, %v388
        %725 = vrot.lane.b32.xlu0 %v723, 64
        %v726 = vpop.permute.xlu0 %725
        %v728 = vmul.f32 %v722, %v726
        %730 = vrot.lane.b32.xlu0 %v728, 64
        %v731 = vpop.permute.xlu0 %730
        %v733 = vadd.f32 %v715, %v731
        %v734 = vtanh.pop %v733
        %v735 = vsub.f32 %v635, %v734
        %737 = vrot.lane.b32.xlu0 %v735, 96
        %v738 = vpop.permute.xlu0 %737
        %v740 = vmul.f32 %v722, %v738
        %742 = vrot.lane.b32.xlu0 %v740, 32
        %v743 = vpop.permute.xlu0 %742
        %v745 = vadd.f32 %v734, %v743
        %747 = vrot.lane.b32.xlu0 %v745, 64
        %v748 = vpop.permute.xlu0 %747
        %s750 = scalar_lea.vmem %s284, 24 [#allocation9]
        %751 = vst.msk [vmem:[%s750] sm:$0xff] %vm305, %v748
        %v752 = vsel %vm305, %v748, 0
        %754 = vmatprep.subr.mxu0 0.0
        %755 = vmatpush1.msra.mxu0 %v294
        %756 = vmatprep.subr.mxu0 0.0
        %757 = vmatpush1.msra.mxu0 %v295
        %758 = vmatprep.subr.mxu0 0.0
        %759 = vmatpush1.msra.mxu0 %v296
        %760 = vmatprep.subr.mxu0 0.0
        %761 = vmatpush1.msra.mxu0 %v297
        %762 = vmatprep.subr.mxu0 0.0
        %763 = vmatpush1.msra.mxu0 0.0
        %764 = vmatprep.subr.mxu0 0.0
        %765 = vmatpush1.msra.mxu0 0.0
        %766 = vmatprep.subr.mxu0 0.0
        %767 = vmatpush1.msra.mxu0 0.0
        %768 = vmatprep.subr.mxu0 0.0
        %769 = vmatpush1.msra.mxu0 0.0
        %770 = vmatprep.subr.mxu0 0.0
        %771 = vmatpush1.msra.mxu0 0.0
        %772 = vmatprep.subr.mxu0 0.0
        %773 = vmatpush1.msra.mxu0 0.0
        %774 = vmatprep.subr.mxu0 0.0
        %775 = vmatpush1.msra.mxu0 0.0
        %776 = vmatprep.subr.mxu0 0.0
        %777 = vmatpush1.msra.mxu0 0.0
        %778 = vmatprep.subr.mxu0 0.0
        %779 = vmatpush1.msra.mxu0 0.0
        %780 = vmatprep.subr.mxu0 0.0
        %781 = vmatpush1.msra.mxu0 0.0
        %782 = vmatprep.subr.mxu0 0.0
        %783 = vmatpush1.msra.mxu0 0.0
        %784 = vmatprep.subr.mxu0 0.0
        %785 = vmatpush1.msra.mxu0 0.0
        %786 = vmatprep.subr.mxu0 0.0
        %787 = vmatpush1.msra.mxu0 0.0
        %788 = vmatprep.subr.mxu0 0.0
        %789 = vmatpush1.msra.mxu0 0.0
        %790 = vmatprep.subr.mxu0 0.0
        %791 = vmatpush1.msra.mxu0 0.0
        %792 = vmatprep.subr.mxu0 0.0
        %793 = vmatpush1.msra.mxu0 0.0
        %794 = vmatprep.subr.mxu0 0.0
        %795 = vmatpush1.msra.mxu0 0.0
        %796 = vmatprep.subr.mxu0 0.0
        %797 = vmatpush1.msra.mxu0 0.0
        %798 = vmatprep.subr.mxu0 0.0
        %799 = vmatpush1.msra.mxu0 0.0
        %800 = vmatprep.subr.mxu0 0.0
        %801 = vmatpush1.msra.mxu0 0.0
        %802 = vmatprep.subr.mxu0 0.0
        %803 = vmatpush1.msra.mxu0 0.0
        %804 = vmatprep.subr.mxu0 0.0
        %805 = vmatpush1.msra.mxu0 0.0
        %806 = vmatprep.subr.mxu0 0.0
        %807 = vmatpush1.msra.mxu0 0.0
        %808 = vmatprep.subr.mxu0 0.0
        %809 = vmatpush1.msra.mxu0 0.0
        %810 = vmatprep.subr.mxu0 0.0
        %811 = vmatpush1.msra.mxu0 0.0
        %812 = vmatprep.subr.mxu0 0.0
        %813 = vmatpush1.msra.mxu0 0.0
        %814 = vmatprep.subr.mxu0 0.0
        %815 = vmatpush1.msra.mxu0 0.0
        %816 = vmatprep.subr.mxu0 0.0
        %817 = vmatpush1.msra.mxu0 0.0
        %818 = vmatprep.mubr.f32.mxu0 0.0
        %819 = vmatmul.mubr.f32.gmra.mrb[0].mxu0 %v752
        %v820 = vpop.f32.mrb[0].mxu0
        %v821 = vadd.f32 0.0, %v820
        %v822 = vpop.f32.mrb[0].mxu0
        %823 = vdwg.mxu0
        %s824 = scalar_lea.vmem %s242, 32 [#allocation3]
        %v825 = vld [vmem:[%s824] sm:$0xff]
        %v826 = vadd.f32 %v825, %v821
        %v827 = vxor.u32 %v826, 2147483648
        %v828 = vmul.f32 %v827, 1.442695
        %v829 = vpow.pop %v828
        %v830 = vadd.f32 %v829, 1.0
        %v831 = vrcp.pop %v830
        %v832 = vmul.f32 1.0, %v831
        %v833 = vadd.f32 %v821, %v388
        %835 = vrot.lane.b32.xlu0 %v833, 64
        %v836 = vpop.permute.xlu0 %835
        %v838 = vmul.f32 %v832, %v836
        %840 = vrot.lane.b32.xlu0 %v838, 64
        %v841 = vpop.permute.xlu0 %840
        %v843 = vadd.f32 %v825, %v841
        %v844 = vtanh.pop %v843
        %v845 = vsub.f32 %v745, %v844
        %847 = vrot.lane.b32.xlu0 %v845, 96
        %v848 = vpop.permute.xlu0 %847
        %v850 = vmul.f32 %v832, %v848
        %852 = vrot.lane.b32.xlu0 %v850, 32
        %v853 = vpop.permute.xlu0 %852
        %v855 = vadd.f32 %v844, %v853
        %857 = vrot.lane.b32.xlu0 %v855, 64
        %v858 = vpop.permute.xlu0 %857
        %s860 = scalar_lea.vmem %s284, 32 [#allocation9]
        %861 = vst.msk [vmem:[%s860] sm:$0xff] %vm305, %v858
        %v862 = vsel %vm305, %v858, 0
        %864 = vmatprep.subr.mxu0 0.0
        %865 = vmatpush1.msra.mxu0 %v294
        %866 = vmatprep.subr.mxu0 0.0
        %867 = vmatpush1.msra.mxu0 %v295
        %868 = vmatprep.subr.mxu0 0.0
        %869 = vmatpush1.msra.mxu0 %v296
        %870 = vmatprep.subr.mxu0 0.0
        %871 = vmatpush1.msra.mxu0 %v297
        %872 = vmatprep.subr.mxu0 0.0
        %873 = vmatpush1.msra.mxu0 0.0
        %874 = vmatprep.subr.mxu0 0.0
        %875 = vmatpush1.msra.mxu0 0.0
        %876 = vmatprep.subr.mxu0 0.0
        %877 = vmatpush1.msra.mxu0 0.0
        %878 = vmatprep.subr.mxu0 0.0
        %879 = vmatpush1.msra.mxu0 0.0
        %880 = vmatprep.subr.mxu0 0.0
        %881 = vmatpush1.msra.mxu0 0.0
        %882 = vmatprep.subr.mxu0 0.0
        %883 = vmatpush1.msra.mxu0 0.0
        %884 = vmatprep.subr.mxu0 0.0
        %885 = vmatpush1.msra.mxu0 0.0
        %886 = vmatprep.subr.mxu0 0.0
        %887 = vmatpush1.msra.mxu0 0.0
        %888 = vmatprep.subr.mxu0 0.0
        %889 = vmatpush1.msra.mxu0 0.0
        %890 = vmatprep.subr.mxu0 0.0
        %891 = vmatpush1.msra.mxu0 0.0
        %892 = vmatprep.subr.mxu0 0.0
        %893 = vmatpush1.msra.mxu0 0.0
        %894 = vmatprep.subr.mxu0 0.0
        %895 = vmatpush1.msra.mxu0 0.0
        %896 = vmatprep.subr.mxu0 0.0
        %897 = vmatpush1.msra.mxu0 0.0
        %898 = vmatprep.subr.mxu0 0.0
        %899 = vmatpush1.msra.mxu0 0.0
        %900 = vmatprep.subr.mxu0 0.0
        %901 = vmatpush1.msra.mxu0 0.0
        %902 = vmatprep.subr.mxu0 0.0
        %903 = vmatpush1.msra.mxu0 0.0
        %904 = vmatprep.subr.mxu0 0.0
        %905 = vmatpush1.msra.mxu0 0.0
        %906 = vmatprep.subr.mxu0 0.0
        %907 = vmatpush1.msra.mxu0 0.0
        %908 = vmatprep.subr.mxu0 0.0
        %909 = vmatpush1.msra.mxu0 0.0
        %910 = vmatprep.subr.mxu0 0.0
        %911 = vmatpush1.msra.mxu0 0.0
        %912 = vmatprep.subr.mxu0 0.0
        %913 = vmatpush1.msra.mxu0 0.0
        %914 = vmatprep.subr.mxu0 0.0
        %915 = vmatpush1.msra.mxu0 0.0
        %916 = vmatprep.subr.mxu0 0.0
        %917 = vmatpush1.msra.mxu0 0.0
        %918 = vmatprep.subr.mxu0 0.0
        %919 = vmatpush1.msra.mxu0 0.0
        %920 = vmatprep.subr.mxu0 0.0
        %921 = vmatpush1.msra.mxu0 0.0
        %922 = vmatprep.subr.mxu0 0.0
        %923 = vmatpush1.msra.mxu0 0.0
        %924 = vmatprep.subr.mxu0 0.0
        %925 = vmatpush1.msra.mxu0 0.0
        %926 = vmatprep.subr.mxu0 0.0
        %927 = vmatpush1.msra.mxu0 0.0
        %928 = vmatprep.mubr.f32.mxu0 0.0
        %929 = vmatmul.mubr.f32.gmra.mrb[0].mxu0 %v862
        %v930 = vpop.f32.mrb[0].mxu0
        %v931 = vadd.f32 0.0, %v930
        %v932 = vpop.f32.mrb[0].mxu0
        %933 = vdwg.mxu0
        %s934 = scalar_lea.vmem %s242, 40 [#allocation3]
        %v935 = vld [vmem:[%s934] sm:$0xff]
        %v936 = vadd.f32 %v935, %v931
        %v937 = vxor.u32 %v936, 2147483648
        %v938 = vmul.f32 %v937, 1.442695
        %v939 = vpow.pop %v938
        %v940 = vadd.f32 %v939, 1.0
        %v941 = vrcp.pop %v940
        %v942 = vmul.f32 1.0, %v941
        %v943 = vadd.f32 %v931, %v388
        %945 = vrot.lane.b32.xlu0 %v943, 64
        %v946 = vpop.permute.xlu0 %945
        %v948 = vmul.f32 %v942, %v946
        %950 = vrot.lane.b32.xlu0 %v948, 64
        %v951 = vpop.permute.xlu0 %950
        %v953 = vadd.f32 %v935, %v951
        %v954 = vtanh.pop %v953
        %v955 = vsub.f32 %v855, %v954
        %957 = vrot.lane.b32.xlu0 %v955, 96
        %v958 = vpop.permute.xlu0 %957
        %v960 = vmul.f32 %v942, %v958
        %962 = vrot.lane.b32.xlu0 %v960, 32
        %v963 = vpop.permute.xlu0 %962
        %v965 = vadd.f32 %v954, %v963
        %967 = vrot.lane.b32.xlu0 %v965, 64
        %v968 = vpop.permute.xlu0 %967
        %s970 = scalar_lea.vmem %s284, 40 [#allocation9]
        %971 = vst.msk [vmem:[%s970] sm:$0xff] %vm305, %v968
        %v972 = vsel %vm305, %v968, 0
        %974 = vmatprep.subr.mxu0 0.0
        %975 = vmatpush1.msra.mxu0 %v294
        %976 = vmatprep.subr.mxu0 0.0
        %977 = vmatpush1.msra.mxu0 %v295
        %978 = vmatprep.subr.mxu0 0.0
        %979 = vmatpush1.msra.mxu0 %v296
        %980 = vmatprep.subr.mxu0 0.0
        %981 = vmatpush1.msra.mxu0 %v297
        %982 = vmatprep.subr.mxu0 0.0
        %983 = vmatpush1.msra.mxu0 0.0
        %984 = vmatprep.subr.mxu0 0.0
        %985 = vmatpush1.msra.mxu0 0.0
        %986 = vmatprep.subr.mxu0 0.0
        %987 = vmatpush1.msra.mxu0 0.0
        %988 = vmatprep.subr.mxu0 0.0
        %989 = vmatpush1.msra.mxu0 0.0
        %990 = vmatprep.subr.mxu0 0.0
        %991 = vmatpush1.msra.mxu0 0.0
        %992 = vmatprep.subr.mxu0 0.0
        %993 = vmatpush1.msra.mxu0 0.0
        %994 = vmatprep.subr.mxu0 0.0
        %995 = vmatpush1.msra.mxu0 0.0
        %996 = vmatprep.subr.mxu0 0.0
        %997 = vmatpush1.msra.mxu0 0.0
        %998 = vmatprep.subr.mxu0 0.0
        %999 = vmatpush1.msra.mxu0 0.0
        %1000 = vmatprep.subr.mxu0 0.0
        %1001 = vmatpush1.msra.mxu0 0.0
        %1002 = vmatprep.subr.mxu0 0.0
        %1003 = vmatpush1.msra.mxu0 0.0
        %1004 = vmatprep.subr.mxu0 0.0
        %1005 = vmatpush1.msra.mxu0 0.0
        %1006 = vmatprep.subr.mxu0 0.0
        %1007 = vmatpush1.msra.mxu0 0.0
        %1008 = vmatprep.subr.mxu0 0.0
        %1009 = vmatpush1.msra.mxu0 0.0
        %1010 = vmatprep.subr.mxu0 0.0
        %1011 = vmatpush1.msra.mxu0 0.0
        %1012 = vmatprep.subr.mxu0 0.0
        %1013 = vmatpush1.msra.mxu0 0.0
        %1014 = vmatprep.subr.mxu0 0.0
        %1015 = vmatpush1.msra.mxu0 0.0
        %1016 = vmatprep.subr.mxu0 0.0
        %1017 = vmatpush1.msra.mxu0 0.0
        %1018 = vmatprep.subr.mxu0 0.0
        %1019 = vmatpush1.msra.mxu0 0.0
        %1020 = vmatprep.subr.mxu0 0.0
        %1021 = vmatpush1.msra.mxu0 0.0
        %1022 = vmatprep.subr.mxu0 0.0
        %1023 = vmatpush1.msra.mxu0 0.0
        %1024 = vmatprep.subr.mxu0 0.0
        %1025 = vmatpush1.msra.mxu0 0.0
        %1026 = vmatprep.subr.mxu0 0.0
        %1027 = vmatpush1.msra.mxu0 0.0
        %1028 = vmatprep.subr.mxu0 0.0
        %1029 = vmatpush1.msra.mxu0 0.0
        %1030 = vmatprep.subr.mxu0 0.0
        %1031 = vmatpush1.msra.mxu0 0.0
        %1032 = vmatprep.subr.mxu0 0.0
        %1033 = vmatpush1.msra.mxu0 0.0
        %1034 = vmatprep.subr.mxu0 0.0
        %1035 = vmatpush1.msra.mxu0 0.0
        %1036 = vmatprep.subr.mxu0 0.0
        %1037 = vmatpush1.msra.mxu0 0.0
        %1038 = vmatprep.mubr.f32.mxu0 0.0
        %1039 = vmatmul.mubr.f32.gmra.mrb[0].mxu0 %v972
        %v1040 = vpop.f32.mrb[0].mxu0
        %v1041 = vadd.f32 0.0, %v1040
        %v1042 = vpop.f32.mrb[0].mxu0
        %1043 = vdwg.mxu0
        %s1044 = scalar_lea.vmem %s242, 48 [#allocation3]
        %v1045 = vld [vmem:[%s1044] sm:$0xff]
        %v1046 = vadd.f32 %v1045, %v1041
        %v1047 = vxor.u32 %v1046, 2147483648
        %v1048 = vmul.f32 %v1047, 1.442695
        %v1049 = vpow.pop %v1048
        %v1050 = vadd.f32 %v1049, 1.0
        %v1051 = vrcp.pop %v1050
        %v1052 = vmul.f32 1.0, %v1051
        %v1053 = vadd.f32 %v1041, %v388
        %1055 = vrot.lane.b32.xlu0 %v1053, 64
        %v1056 = vpop.permute.xlu0 %1055
        %v1058 = vmul.f32 %v1052, %v1056
        %1060 = vrot.lane.b32.xlu0 %v1058, 64
        %v1061 = vpop.permute.xlu0 %1060
        %v1063 = vadd.f32 %v1045, %v1061
        %v1064 = vtanh.pop %v1063
        %v1065 = vsub.f32 %v965, %v1064
        %1067 = vrot.lane.b32.xlu0 %v1065, 96
        %v1068 = vpop.permute.xlu0 %1067
        %v1070 = vmul.f32 %v1052, %v1068
        %1072 = vrot.lane.b32.xlu0 %v1070, 32
        %v1073 = vpop.permute.xlu0 %1072
        %v1075 = vadd.f32 %v1064, %v1073
        %1077 = vrot.lane.b32.xlu0 %v1075, 64
        %v1078 = vpop.permute.xlu0 %1077
        %s1080 = scalar_lea.vmem %s284, 48 [#allocation9]
        %1081 = vst.msk [vmem:[%s1080] sm:$0xff] %vm305, %v1078
        %v1082 = vsel %vm305, %v1078, 0
        %1084 = vmatprep.subr.mxu0 0.0
        %1085 = vmatpush1.msra.mxu0 %v294
        %1086 = vmatprep.subr.mxu0 0.0
        %1087 = vmatpush1.msra.mxu0 %v295
        %1088 = vmatprep.subr.mxu0 0.0
        %1089 = vmatpush1.msra.mxu0 %v296
        %1090 = vmatprep.subr.mxu0 0.0
        %1091 = vmatpush1.msra.mxu0 %v297
        %1092 = vmatprep.subr.mxu0 0.0
        %1093 = vmatpush1.msra.mxu0 0.0
        %1094 = vmatprep.subr.mxu0 0.0
        %1095 = vmatpush1.msra.mxu0 0.0
        %1096 = vmatprep.subr.mxu0 0.0
        %1097 = vmatpush1.msra.mxu0 0.0
        %1098 = vmatprep.subr.mxu0 0.0
        %1099 = vmatpush1.msra.mxu0 0.0
        %1100 = vmatprep.subr.mxu0 0.0
        %1101 = vmatpush1.msra.mxu0 0.0
        %1102 = vmatprep.subr.mxu0 0.0
        %1103 = vmatpush1.msra.mxu0 0.0
        %1104 = vmatprep.subr.mxu0 0.0
        %1105 = vmatpush1.msra.mxu0 0.0
        %1106 = vmatprep.subr.mxu0 0.0
        %1107 = vmatpush1.msra.mxu0 0.0
        %1108 = vmatprep.subr.mxu0 0.0
        %1109 = vmatpush1.msra.mxu0 0.0
        %1110 = vmatprep.subr.mxu0 0.0
        %1111 = vmatpush1.msra.mxu0 0.0
        %1112 = vmatprep.subr.mxu0 0.0
        %1113 = vmatpush1.msra.mxu0 0.0
        %1114 = vmatprep.subr.mxu0 0.0
        %1115 = vmatpush1.msra.mxu0 0.0
        %1116 = vmatprep.subr.mxu0 0.0
        %1117 = vmatpush1.msra.mxu0 0.0
        %1118 = vmatprep.subr.mxu0 0.0
        %1119 = vmatpush1.msra.mxu0 0.0
        %1120 = vmatprep.subr.mxu0 0.0
        %1121 = vmatpush1.msra.mxu0 0.0
        %1122 = vmatprep.subr.mxu0 0.0
        %1123 = vmatpush1.msra.mxu0 0.0
        %1124 = vmatprep.subr.mxu0 0.0
        %1125 = vmatpush1.msra.mxu0 0.0
        %1126 = vmatprep.subr.mxu0 0.0
        %1127 = vmatpush1.msra.mxu0 0.0
        %1128 = vmatprep.subr.mxu0 0.0
        %1129 = vmatpush1.msra.mxu0 0.0
        %1130 = vmatprep.subr.mxu0 0.0
        %1131 = vmatpush1.msra.mxu0 0.0
        %1132 = vmatprep.subr.mxu0 0.0
        %1133 = vmatpush1.msra.mxu0 0.0
        %1134 = vmatprep.subr.mxu0 0.0
        %1135 = vmatpush1.msra.mxu0 0.0
        %1136 = vmatprep.subr.mxu0 0.0
        %1137 = vmatpush1.msra.mxu0 0.0
        %1138 = vmatprep.subr.mxu0 0.0
        %1139 = vmatpush1.msra.mxu0 0.0
        %1140 = vmatprep.subr.mxu0 0.0
        %1141 = vmatpush1.msra.mxu0 0.0
        %1142 = vmatprep.subr.mxu0 0.0
        %1143 = vmatpush1.msra.mxu0 0.0
        %1144 = vmatprep.subr.mxu0 0.0
        %1145 = vmatpush1.msra.mxu0 0.0
        %1146 = vmatprep.subr.mxu0 0.0
        %1147 = vmatpush1.msra.mxu0 0.0
        %1148 = vmatprep.mubr.f32.mxu0 0.0
        %1149 = vmatmul.mubr.f32.gmra.mrb[0].mxu0 %v1082
        %v1150 = vpop.f32.mrb[0].mxu0
        %v1151 = vadd.f32 0.0, %v1150
        %v1152 = vpop.f32.mrb[0].mxu0
        %1153 = vdwg.mxu0
        %s1154 = scalar_lea.vmem %s242, 56 [#allocation3]
        %v1155 = vld [vmem:[%s1154] sm:$0xff]
        %v1156 = vadd.f32 %v1155, %v1151
        %v1157 = vxor.u32 %v1156, 2147483648
        %v1158 = vmul.f32 %v1157, 1.442695
        %v1159 = vpow.pop %v1158
        %v1160 = vadd.f32 %v1159, 1.0
        %v1161 = vrcp.pop %v1160
        %v1162 = vmul.f32 1.0, %v1161
        %v1163 = vadd.f32 %v1151, %v388
        %1165 = vrot.lane.b32.xlu0 %v1163, 64
        %v1166 = vpop.permute.xlu0 %1165
        %v1168 = vmul.f32 %v1162, %v1166
        %1170 = vrot.lane.b32.xlu0 %v1168, 64
        %v1171 = vpop.permute.xlu0 %1170
        %v1173 = vadd.f32 %v1155, %v1171
        %v1174 = vtanh.pop %v1173
        %v1175 = vsub.f32 %v1075, %v1174
        %1177 = vrot.lane.b32.xlu0 %v1175, 96
        %v1178 = vpop.permute.xlu0 %1177
        %v1180 = vmul.f32 %v1162, %v1178
        %1182 = vrot.lane.b32.xlu0 %v1180, 32
        %v1183 = vpop.permute.xlu0 %1182
        %v1185 = vadd.f32 %v1174, %v1183
        %1187 = vrot.lane.b32.xlu0 %v1185, 64
        %v1188 = vpop.permute.xlu0 %1187
        %s1190 = scalar_lea.vmem %s284, 56 [#allocation9]
        %1191 = vst.msk [vmem:[%s1190] sm:$0xff] %vm305, %v1188
        %1192 = vst.msk [vmem:[#allocation2] sm:$0xff] %vm305, %v1188
        %s1193 = sand.u32 %s142, 1
        %s1194 = scalar_lea.sflag [#allocation5], %s1193
        %s1195 = sand.u32 %s142, 1
        %s1196 = smul.addr %s1195, 64
        %s1197 = scalar_lea.vmem [#allocation9], %s1196
        // Predicated region
        $region53: #{tpu_custom_call.1} parent=35 // pred_check
          %p1198 = pneg %p152
        $region54: #{tpu_custom_call.1} parent=35 // pred_check_branch
          %1200 = sbr.rel (%p1198) target = $region56
        $region55: #{tpu_custom_call.1} parent=35 // pred_region
          %s1201 = smul.u32 8, %s29
          %s1203 = ssub.s32 1024, 1024
          %1204 = vsyncadd %s1194, %s1203
          %s1205 = smul.addr %s1201, 2
          %s1206 = sadd.s32 %s28, %s1205
          %s1207 = smul.addr %s1206, 128
          %s1208 = scalar_lea.hbm %s4, %s1207
          %s1209 = sshll.u32 %s1197, 4
          %s1210 = int_to_ptr.vmem [resolvable:$true] %s1209
          %1215 = dma.vmem_to_hbm [thread:$0]  %s1210, 1024, %s1208, %s1194, 128, 256, 8
        $region56: #{tpu_custom_call.1} parent=35 // pred_fallthru
          _
      $region36: #{tpu_custom_call.1} parent=5 // pred_fallthru
        _
      %p1216 = scmp.le.s32.totalorder 2, %s19
      // Predicated region
      $region57: #{tpu_custom_call.1} parent=5 // pred_check
        %p1217 = pneg %p1216
      $region58: #{tpu_custom_call.1} parent=5 // pred_check_branch
        %1219 = sbr.rel (%p1217) target = $region60
      $region59: #{tpu_custom_call.1} parent=5 // pred_region
        %s1220 = ssub.s32 %s19, 2
        // Predicated region
        $region61: #{tpu_custom_call.1} parent=59 // pred_check
          %p1221 = pneg %p158
        $region62: #{tpu_custom_call.1} parent=59 // pred_check_branch
          %1223 = sbr.rel (%p1221) target = $region64
        $region63: #{tpu_custom_call.1} parent=59 // pred_region
          %s1224 = sand.u32 %s143, 1
          %s1225 = scalar_lea.sflag [#allocation5], %s1224
          %s1226 = sand.u32 %s143, 1
          %s1227 = smul.addr %s1226, 64
          %s1228 = scalar_lea.vmem [#allocation9], %s1227
          %1229 = dma.done %s1225, 1024
        $region64: #{tpu_custom_call.1} parent=59 // pred_fallthru
          _
      $region60: #{tpu_custom_call.1} parent=5 // pred_fallthru
        _
    $region6: #{tpu_custom_call.1} parent=1 // loop_footer
      %s23 = sadd.s32 1, %s19
    $region7: #{tpu_custom_call.1} parent=1 // loop_footer_branch
      %18 = sbr.rel target = $region3
    $region8: #{tpu_custom_call.1} parent=1 // loop_exit
      _
    %1230 = vsyncpa [#allocation4], 1
    %s1231 = scalar_lea.sflag [#allocation4], 1
    %1232 = vsyncpa %s1231, 1
    %1233 = vsyncpa [#allocation7], 1
    %s1234 = scalar_lea.sflag [#allocation7], 1
    %1235 = vsyncpa %s1234, 1
    %1236 = vsyncpa [#allocation5], 1
    %s1237 = scalar_lea.sflag [#allocation5], 1
    %1238 = vsyncpa %s1237, 1

</llo_original>
